<compile_context>
chip_gen: v6e
topology: v6e:2x2x1
jax: 0.10.0
libtpu: 0.0.40
codegen_flags: <defaults>
</compile_context>

<pallas_src>
import jax
import jax.numpy as jnp
from jax import lax
from jax.experimental import pallas as pl
from jax.experimental.pallas import tpu as pltpu

EPS = 1e-5                      # nn.BatchNorm2d default eps
LANE = 128                      # TPU lane width
MXU_DTYPE = jnp.bfloat16        # MXU operand dtype (accumulation stays f32)
OUT_DTYPE = jnp.bfloat16        # block-output store dtype
VMEM_LIMIT = 32 * 1024 * 1024   # explicit scoped-VMEM budget (fits v5e/v6e/v7x)


def _round_up(a, b):
    return ((a + b - 1) // b) * b


# ----------------------------------------------------------------------------
# Pallas kernels
# ----------------------------------------------------------------------------
def _gemm_stats_kernel(x_ref, w_ref, y_ref, st_ref):
    """One M-tile of conv-as-GEMM: y = x @ w (f32 accumulation), plus per-tile
    per-channel sum / sum-of-squares partials for BatchNorm statistics."""
    y = jnp.dot(x_ref[...], w_ref[...], preferred_element_type=jnp.float32)
    y_ref[...] = y
    s = jnp.sum(y, axis=0, keepdims=True)               # (1, CO)
    ss = jnp.sum(y * y, axis=0, keepdims=True)           # (1, CO)
    st_ref[...] = jnp.concatenate(
        [s, ss, jnp.zeros((6, y.shape[1]), jnp.float32)], axis=0)   # (8, CO)


def _bn_residual_relu_kernel(y2_ref, sc_ref, a2_ref, b2_ref, asc_ref, bsc_ref,
                             o_ref):
    """out = relu(bn2(y2) + bn_sc(sc)); the BNs are per-channel affines whose
    scale/shift were finalized from the cross-tile statistics."""
    pre = (y2_ref[...] * a2_ref[...] + b2_ref[...]
           + sc_ref[...] * asc_ref[...] + bsc_ref[...])
    o_ref[...] = jnp.maximum(pre, 0.0).astype(o_ref.dtype)


# ----------------------------------------------------------------------------
# pallas_call wrappers
# ----------------------------------------------------------------------------
def _gemm_stats(x, w, tile_m):
    """Tiled GEMM + BN-stat partials.  grid=(T,), all axes 'parallel'."""
    mp, k = x.shape
    _, co = w.shape
    t = mp // tile_m
    flops = 2 * mp * k * co
    bytes_accessed = (x.size * x.dtype.itemsize + w.size * w.dtype.itemsize
                      + mp * co * 4 + t * 8 * co * 4)
    return pl.pallas_call(
        _gemm_stats_kernel,
        out_shape=(jax.ShapeDtypeStruct((mp, co), jnp.float32),
                   jax.ShapeDtypeStruct((t * 8, co), jnp.float32)),
        grid=(t,),
        in_specs=[pl.BlockSpec((tile_m, k), lambda i: (i, 0)),
                  pl.BlockSpec((k, co), lambda i: (0, 0))],   # weights resident
        out_specs=[pl.BlockSpec((tile_m, co), lambda i: (i, 0)),
                   pl.BlockSpec((8, co), lambda i: (i, 0))],
        compiler_params=pltpu.CompilerParams(
            dimension_semantics=("parallel",),
            vmem_limit_bytes=VMEM_LIMIT),
        cost_estimate=pl.CostEstimate(flops=flops, transcendentals=0,
                                      bytes_accessed=bytes_accessed),
    )(x, w)


def _bn_residual_relu(y2, sc, a2, b2, asc, bsc, tile_m):
    mp, cp = y2.shape
    t = mp // tile_m
    row = lambda i: (i, 0)
    const = lambda i: (0, 0)
    bytes_accessed = 2 * mp * cp * 4 + mp * cp * 2 + 4 * cp * 4
    return pl.pallas_call(
        _bn_residual_relu_kernel,
        out_shape=jax.ShapeDtypeStruct((mp, cp), OUT_DTYPE),
        grid=(t,),
        in_specs=[pl.BlockSpec((tile_m, cp), row),
                  pl.BlockSpec((tile_m, cp), row),
                  pl.BlockSpec((1, cp), const),
                  pl.BlockSpec((1, cp), const),
                  pl.BlockSpec((1, cp), const),
                  pl.BlockSpec((1, cp), const)],
        out_specs=pl.BlockSpec((tile_m, cp), row),
        compiler_params=pltpu.CompilerParams(
            dimension_semantics=("parallel",),
            vmem_limit_bytes=VMEM_LIMIT),
        cost_estimate=pl.CostEstimate(flops=6 * mp * cp, transcendentals=0,
                                      bytes_accessed=bytes_accessed),
    )(y2, sc, a2, b2, asc, bsc)


# ----------------------------------------------------------------------------
# Layout plumbing (wrapper-side, XLA): im2col, weight folding, BN finalize
# ----------------------------------------------------------------------------
def _im2col_3x3(x_nhwc, stride):
    """3x3 / pad=1 / stride=s patches, tap-major channel-minor: (M, 9*C)."""
    n, h, w, c = x_nhwc.shape
    ho = (h - 1) // stride + 1
    wo = (w - 1) // stride + 1
    xp = jnp.pad(x_nhwc, ((0, 0), (1, 1), (1, 1), (0, 0)))
    taps = []
    for dy in range(3):
        for dx in range(3):
            taps.append(xp[:, dy:dy + (ho - 1) * stride + 1:stride,
                           dx:dx + (wo - 1) * stride + 1:stride, :])
    p = jnp.concatenate(taps, axis=-1).reshape(n * ho * wo, 9 * c)
    return p, ho, wo


def _fold_w3x3(w_oihw):
    """(Cout, Cin, 3, 3) -> (9*Cin, Cout), tap-major channel-minor (matches
    _im2col_3x3's K layout)."""
    co, ci = w_oihw.shape[0], w_oihw.shape[1]
    return jnp.transpose(w_oihw, (2, 3, 1, 0)).reshape(9 * ci, co)


def _bn_affine(s, ss, count, gamma, beta, cp):
    """Training-mode BatchNorm as per-channel affine y*scale + shift derived
    from single-pass sum / sum-of-squares statistics (biased variance)."""
    mean = s / count
    var = ss / count - mean * mean
    gp = jnp.pad(gamma, (0, cp - gamma.shape[0]))
    bp = jnp.pad(beta, (0, cp - beta.shape[0]))
    scale = gp * lax.rsqrt(var + EPS)
    shift = bp - mean * scale
    return scale.reshape(1, cp), shift.reshape(1, cp)


def resnet_block_forward(x_nchw, params, stride, tile_m=256):
    """ResNetBlock forward (training-mode BN).  NCHW f32 in, NCHW f32 out."""
    N, Cin, H, W = x_nchw.shape
    Cout = params["w1"].shape[0]
    has_ds = "wd" in params
    assert has_ds == (stride != 1)
    if not has_ds:
        assert Cin == Cout, "identity shortcut requires in_ch == out_ch"

    Cp = _round_up(Cout, LANE)              # lane-padded output channels
    K1 = _round_up(9 * Cin, LANE)           # folded conv1 contraction dim
    K2 = _round_up(9 * Cout, LANE)          # folded conv2 contraction dim

    x_nhwc = jnp.transpose(x_nchw, (0, 2, 3, 1))
    p1, Ho, Wo = _im2col_3x3(x_nhwc, stride)            # (M, 9*Cin) f32
    M = N * Ho * Wo
    tile_m = _round_up(min(tile_m, M), 8)
    Mp = _round_up(M, tile_m)

    p1 = jnp.pad(p1, ((0, Mp - M), (0, K1 - 9 * Cin))).astype(MXU_DTYPE)

    # Stage-A weights: folded conv1; 1x1 downsample conv embedded at the
    # centre-tap rows and appended as output columns [Cp, 2*Cp).
    w1f = jnp.pad(_fold_w3x3(params["w1"]),
                  ((0, K1 - 9 * Cin), (0, Cp - Cout)))
    if has_ds:
        wd = params["wd"][:, :, 0, 0].T                          # (Cin, Cout)
        wd_emb = jnp.zeros((K1, Cp), jnp.float32)
        wd_emb = wd_emb.at[4 * Cin:5 * Cin, :Cout].set(wd)
        w_a = jnp.concatenate([w1f, wd_emb], axis=1)             # (K1, 2*Cp)
    else:
        w_a = w1f                                                # (K1, Cp)
    w_a = w_a.astype(MXU_DTYPE)

    # --- stage A: conv1 (+ downsample conv), pre-BN, + stat partials --------
    y1sc, stats_a = _gemm_stats(p1, w_a, tile_m)
    sums_a = jnp.sum(stats_a.reshape(-1, 8, w_a.shape[1]), axis=0)
    # row 0 = per-channel sum, row 1 = per-channel sum of squares

    # --- glue: bn1 affine + relu (global-stat sync point), im2col for conv2 --
    scale1, shift1 = _bn_affine(sums_a[0, :Cp], sums_a[1, :Cp], M,
                                params["g1"], params["b1"], Cp)
    z1 = jnp.maximum(y1sc[:M, :Cp] * scale1 + shift1, 0.0)
    z1 = z1[:, :Cout].reshape(N, Ho, Wo, Cout)

    p2, _, _ = _im2col_3x3(z1, 1)                                # (M, 9*Cout)
    p2 = jnp.pad(p2, ((0, Mp - M), (0, K2 - 9 * Cout))).astype(MXU_DTYPE)
    w2f = jnp.pad(_fold_w3x3(params["w2"]),
                  ((0, K2 - 9 * Cout), (0, Cp - Cout))).astype(MXU_DTYPE)

    # --- stage B: conv2, pre-BN, + stat partials ------------------------------
    y2, stats_b = _gemm_stats(p2, w2f, tile_m)
    sums_b = jnp.sum(stats_b.reshape(-1, 8, Cp), axis=0)
    scale2, shift2 = _bn_affine(sums_b[0], sums_b[1], M,
                                params["g2"], params["b2"], Cp)

    # --- shortcut -------------------------------------------------------------
    if has_ds:
        scale_sc, shift_sc = _bn_affine(sums_a[0, Cp:], sums_a[1, Cp:], M,
                                        params["gd"], params["bd"], Cp)
        sc = y1sc[:, Cp:]                       # (Mp, Cp) f32 pre-BN 1x1 conv
    else:
        # Identity residual: original f32 input, never quantised to bf16.
        scale_sc = jnp.ones((1, Cp), jnp.float32)
        shift_sc = jnp.zeros((1, Cp), jnp.float32)
        sc = jnp.pad(x_nhwc.reshape(M, Cin),
                     ((0, Mp - M), (0, Cp - Cin))).astype(jnp.float32)

    # --- stage C: bn2 + shortcut-affine + residual add + relu -----------------
    out = _bn_residual_relu(y2, sc, scale2, shift2, scale_sc, shift_sc, tile_m)

    out = out[:M, :Cout].reshape(N, Ho, Wo, Cout)
    return jnp.transpose(out, (0, 3, 1, 2)).astype(jnp.float32)


# ----------------------------------------------------------------------------
# Pure-JAX reference (for correctness checking)
# ----------------------------------------------------------------------------
def _conv_ref(x_nhwc, w_oihw, stride, padding, dtype):
    return lax.conv_general_dilated(
        x_nhwc.astype(dtype),
        jnp.transpose(w_oihw, (2, 3, 1, 0)).astype(dtype),
        window_strides=(stride, stride),
        padding=[(padding, padding), (padding, padding)],
        dimension_numbers=("NHWC", "HWIO", "NHWC"),
        preferred_element_type=jnp.float32)


def _bn_ref(y, gamma, beta):
    mean = jnp.mean(y, axis=(0, 1, 2), keepdims=True)
    var = jnp.mean(jnp.square(y - mean), axis=(0, 1, 2), keepdims=True)
    return (y - mean) * lax.rsqrt(var + EPS) * gamma + beta


def resnet_block_ref(x_nchw, p, stride, dtype=jnp.float32):
    """Reference forward; `dtype` = conv-operand dtype (bf16 mirrors the
    kernel's MXU quantization, f32 gives the exact PyTorch math)."""
    x = jnp.transpose(x_nchw, (0, 2, 3, 1))
    y = jax.nn.relu(_bn_ref(_conv_ref(x, p["w1"], stride, 1, dtype),
                            p["g1"], p["b1"]))
    y = _bn_ref(_conv_ref(y, p["w2"], 1, 1, dtype), p["g2"], p["b2"])
    if stride == 1:
        sc = x                      # identity residual stays f32 (like PyTorch)
    else:
        sc = _bn_ref(_conv_ref(x, p["wd"], stride, 0, dtype),
                     p["gd"], p["bd"])
    out = jax.nn.relu(sc + y)
    return jnp.transpose(out, (0, 3, 1, 2))


# ----------------------------------------------------------------------------
# Deterministic parameter init (shapes per nn.Module __init__)
# ----------------------------------------------------------------------------
def init_resnet_block(key, in_ch, out_ch, stride):
    ks = jax.random.split(key, 9)
    n = lambda k, s: 0.1 * jax.random.normal(k, s, jnp.float32)
    p = {
        "w1": n(ks[0], (out_ch, in_ch, 3, 3)),
        "g1": 1.0 + n(ks[1], (out_ch,)),
        "b1": n(ks[2], (out_ch,)),
        "w2": n(ks[3], (out_ch, out_ch, 3, 3)),
        "g2": 1.0 + n(ks[4], (out_ch,)),
        "b2": n(ks[5], (out_ch,)),
    }
    if stride != 1:
        p["wd"] = n(ks[6], (out_ch, in_ch, 1, 1))
        p["gd"] = 1.0 + n(ks[7], (out_ch,))
        p["bd"] = n(ks[8], (out_ch,))
    return p


if __name__ == "__main__":
    key = jax.random.PRNGKey(0)
    kx1, kx2, kp1, kp2 = jax.random.split(key, 4)

    # Case 1: stride=2, in_ch != out_ch  ->  1x1-conv + BN downsample path.
    # tile_m=64 -> multi-step grids (M=128 / 512) so pipelining is exercised.
    x1 = jax.random.normal(kx1, (2, 4, 16, 16), jnp.float32)   # NCHW
    p1 = init_resnet_block(kp1, 4, 8, stride=2)
    fwd1 = jax.jit(lambda xx: resnet_block_forward(xx, p1, 2, tile_m=64))
    out1 = jax.block_until_ready(fwd1(x1))
    assert out1.shape == (2, 8, 8, 8), out1.shape
    ref1q = resnet_block_ref(x1, p1, 2, dtype=MXU_DTYPE)   # matched quantization
    d1 = float(jnp.max(jnp.abs(out1 - ref1q)))
    assert jnp.allclose(out1, ref1q, atol=5e-2, rtol=5e-2), d1
    ref1f = resnet_block_ref(x1, p1, 2, dtype=jnp.float32)  # exact f32 math
    d1f = float(jnp.max(jnp.abs(out1 - ref1f)))
    assert jnp.allclose(out1, ref1f, atol=1.5e-1, rtol=1.5e-1), d1f

    # Case 2: stride=1, identity shortcut (f32 residual).
    x2 = jax.random.normal(kx2, (2, 8, 16, 16), jnp.float32)
    p2 = init_resnet_block(kp2, 8, 8, stride=1)
    fwd2 = jax.jit(lambda xx: resnet_block_forward(xx, p2, 1, tile_m=64))
    out2 = jax.block_until_ready(fwd2(x2))
    assert out2.shape == (2, 8, 16, 16), out2.shape
    ref2q = resnet_block_ref(x2, p2, 1, dtype=MXU_DTYPE)
    d2 = float(jnp.max(jnp.abs(out2 - ref2q)))
    assert jnp.allclose(out2, ref2q, atol=5e-2, rtol=5e-2), d2
    ref2f = resnet_block_ref(x2, p2, 1, dtype=jnp.float32)
    d2f = float(jnp.max(jnp.abs(out2 - ref2f)))
    assert jnp.allclose(out2, ref2f, atol=1.5e-1, rtol=1.5e-1), d2f

    print("KERNEL_OK")
</pallas_src>

<mosaic_0001>
module attributes {stable_mosaic.version = 11 : i64} {
  func.func @_gemm_stats_kernel(%arg0: i32, %arg1: memref<64x128xbf16, #tpu.memory_space<vmem>>, %arg2: memref<128x256xbf16, #tpu.memory_space<vmem>>, %arg3: memref<64x256xf32, #tpu.memory_space<vmem>>, %arg4: memref<8x256xf32, #tpu.memory_space<vmem>>) attributes {dimension_semantics = [#tpu.dimension_semantics<parallel>], iteration_bounds = array<i64: 2>, scalar_prefetch = 0 : i64, scratch_operands = 0 : i64, tpu.core_type = #tpu.core_type<tc>, window_params = [{transform_indices = @transform_0, window_bounds = array<i64: 64, 128>}, {pipeline_mode = #tpu.pipeline_mode<synchronous>, transform_indices = @transform_1, window_bounds = array<i64: 128, 256>}, {transform_indices = @transform_2, window_bounds = array<i64: 64, 256>}, {transform_indices = @transform_3, window_bounds = array<i64: 8, 256>}]} {
    %c0 = arith.constant 0 : index
    %c0_0 = arith.constant 0 : index
    %0 = vector.load %arg1[%c0, %c0_0] : memref<64x128xbf16, #tpu.memory_space<vmem>>, vector<64x128xbf16>
    %c0_1 = arith.constant 0 : index
    %c0_2 = arith.constant 0 : index
    %1 = vector.load %arg2[%c0_1, %c0_2] : memref<128x256xbf16, #tpu.memory_space<vmem>>, vector<128x256xbf16>
    %cst = arith.constant dense<0.000000e+00> : vector<64x256xf32>
    %2 = tpu.matmul %0, %1, %cst {dimension_numbers = #tpu.dot_dimension_numbers<[1], [0], [0], [1], [0, 0, 1, 1], [], []>} : vector<64x128xbf16>, vector<128x256xbf16>, vector<64x256xf32> -> vector<64x256xf32>
    %c0_3 = arith.constant 0 : index
    %c0_4 = arith.constant 0 : index
    %3 = vector.load %arg3[%c0_3, %c0_4] : memref<64x256xf32, #tpu.memory_space<vmem>>, vector<64x256xf32>
    tpu.vector_store %arg3[%c0_3, %c0_4], %2 {strides = array<i32>} : memref<64x256xf32, #tpu.memory_space<vmem>>, vector<64x256xf32>,
    %cst_5 = arith.constant dense<0.000000e+00> : vector<256xf32>
    %4 = vector.multi_reduction <add>, %2, %cst_5 [0] : vector<64x256xf32> to vector<256xf32>
    %5 = vector.shape_cast %4 : vector<256xf32> to vector<1x256xf32>
    %6 = arith.mulf %2, %2 : vector<64x256xf32>
    %cst_6 = arith.constant dense<0.000000e+00> : vector<256xf32>
    %7 = vector.multi_reduction <add>, %6, %cst_6 [0] : vector<64x256xf32> to vector<256xf32>
    %8 = vector.shape_cast %7 : vector<256xf32> to vector<1x256xf32>
    %cst_7 = arith.constant 0.000000e+00 : f32
    %9 = vector.broadcast %cst_7 : f32 to vector<6x256xf32>
    %10 = tpu.concatenate %5, %8, %9 in 0 : vector<1x256xf32>, vector<1x256xf32>, vector<6x256xf32> -> vector<8x256xf32>
    %c0_8 = arith.constant 0 : index
    %c0_9 = arith.constant 0 : index
    %11 = vector.load %arg4[%c0_8, %c0_9] : memref<8x256xf32, #tpu.memory_space<vmem>>, vector<8x256xf32>
    tpu.vector_store %arg4[%c0_8, %c0_9], %10 {strides = array<i32>} : memref<8x256xf32, #tpu.memory_space<vmem>>, vector<8x256xf32>,
    return
  }
  func.func @transform_0(%arg0: i32) -> (i32, i32) {
    %c0_i32 = arith.constant 0 : i32
    %c0_i32_0 = arith.constant 0 : i32
    return %arg0, %c0_i32 : i32, i32
  }
  func.func @transform_1(%arg0: i32) -> (i32, i32) {
    %c0_i32 = arith.constant 0 : i32
    %c0_i32_0 = arith.constant 0 : i32
    %c0_i32_1 = arith.constant 0 : i32
    return %c0_i32, %c0_i32_0 : i32, i32
  }
  func.func @transform_2(%arg0: i32) -> (i32, i32) {
    %c0_i32 = arith.constant 0 : i32
    %c0_i32_0 = arith.constant 0 : i32
    return %arg0, %c0_i32 : i32, i32
  }
  func.func @transform_3(%arg0: i32) -> (i32, i32) {
    %c0_i32 = arith.constant 0 : i32
    %c0_i32_0 = arith.constant 0 : i32
    return %arg0, %c0_i32 : i32, i32
  }
}

module attributes {stable_mosaic.version = 11 : i64} {
  func.func @_gemm_stats_kernel(%arg0: i32, %arg1: memref<64x128xbf16, #tpu.memory_space<vmem>>, %arg2: memref<128x128xbf16, #tpu.memory_space<vmem>>, %arg3: memref<64x128xf32, #tpu.memory_space<vmem>>, %arg4: memref<8x128xf32, #tpu.memory_space<vmem>>) attributes {dimension_semantics = [#tpu.dimension_semantics<parallel>], iteration_bounds = array<i64: 2>, scalar_prefetch = 0 : i64, scratch_operands = 0 : i64, tpu.core_type = #tpu.core_type<tc>, window_params = [{transform_indices = @transform_0, window_bounds = array<i64: 64, 128>}, {pipeline_mode = #tpu.pipeline_mode<synchronous>, transform_indices = @transform_1, window_bounds = array<i64: 128, 128>}, {transform_indices = @transform_2, window_bounds = array<i64: 64, 128>}, {transform_indices = @transform_3, window_bounds = array<i64: 8, 128>}]} {
    %c0 = arith.constant 0 : index
    %c0_0 = arith.constant 0 : index
    %0 = vector.load %arg1[%c0, %c0_0] : memref<64x128xbf16, #tpu.memory_space<vmem>>, vector<64x128xbf16>
    %c0_1 = arith.constant 0 : index
    %c0_2 = arith.constant 0 : index
    %1 = vector.load %arg2[%c0_1, %c0_2] : memref<128x128xbf16, #tpu.memory_space<vmem>>, vector<128x128xbf16>
    %cst = arith.constant dense<0.000000e+00> : vector<64x128xf32>
    %2 = tpu.matmul %0, %1, %cst {dimension_numbers = #tpu.dot_dimension_numbers<[1], [0], [0], [1], [0, 0, 1, 1], [], []>} : vector<64x128xbf16>, vector<128x128xbf16>, vector<64x128xf32> -> vector<64x128xf32>
    %c0_3 = arith.constant 0 : index
    %c0_4 = arith.constant 0 : index
    %3 = vector.load %arg3[%c0_3, %c0_4] : memref<64x128xf32, #tpu.memory_space<vmem>>, vector<64x128xf32>
    tpu.vector_store %arg3[%c0_3, %c0_4], %2 {strides = array<i32>} : memref<64x128xf32, #tpu.memory_space<vmem>>, vector<64x128xf32>,
    %cst_5 = arith.constant dense<0.000000e+00> : vector<128xf32>
    %4 = vector.multi_reduction <add>, %2, %cst_5 [0] : vector<64x128xf32> to vector<128xf32>
    %5 = vector.shape_cast %4 : vector<128xf32> to vector<1x128xf32>
    %6 = arith.mulf %2, %2 : vector<64x128xf32>
    %cst_6 = arith.constant dense<0.000000e+00> : vector<128xf32>
    %7 = vector.multi_reduction <add>, %6, %cst_6 [0] : vector<64x128xf32> to vector<128xf32>
    %8 = vector.shape_cast %7 : vector<128xf32> to vector<1x128xf32>
    %cst_7 = arith.constant 0.000000e+00 : f32
    %9 = vector.broadcast %cst_7 : f32 to vector<6x128xf32>
    %10 = tpu.concatenate %5, %8, %9 in 0 : vector<1x128xf32>, vector<1x128xf32>, vector<6x128xf32> -> vector<8x128xf32>
    %c0_8 = arith.constant 0 : index
    %c0_9 = arith.constant 0 : index
    %11 = vector.load %arg4[%c0_8, %c0_9] : memref<8x128xf32, #tpu.memory_space<vmem>>, vector<8x128xf32>
    tpu.vector_store %arg4[%c0_8, %c0_9], %10 {strides = array<i32>} : memref<8x128xf32, #tpu.memory_space<vmem>>, vector<8x128xf32>,
    return
  }
  func.func @transform_0(%arg0: i32) -> (i32, i32) {
    %c0_i32 = arith.constant 0 : i32
    %c0_i32_0 = arith.constant 0 : i32
    return %arg0, %c0_i32 : i32, i32
  }
  func.func @transform_1(%arg0: i32) -> (i32, i32) {
    %c0_i32 = arith.constant 0 : i32
    %c0_i32_0 = arith.constant 0 : i32
    %c0_i32_1 = arith.constant 0 : i32
    return %c0_i32, %c0_i32_0 : i32, i32
  }
  func.func @transform_2(%arg0: i32) -> (i32, i32) {
    %c0_i32 = arith.constant 0 : i32
    %c0_i32_0 = arith.constant 0 : i32
    return %arg0, %c0_i32 : i32, i32
  }
  func.func @transform_3(%arg0: i32) -> (i32, i32) {
    %c0_i32 = arith.constant 0 : i32
    %c0_i32_0 = arith.constant 0 : i32
    return %arg0, %c0_i32 : i32, i32
  }
}

module attributes {stable_mosaic.version = 11 : i64} {
  func.func @_bn_residual_relu_kernel(%arg0: i32, %arg1: memref<64x128xf32, #tpu.memory_space<vmem>>, %arg2: memref<64x128xf32, #tpu.memory_space<vmem>>, %arg3: memref<1x128xf32, #tpu.memory_space<vmem>>, %arg4: memref<1x128xf32, #tpu.memory_space<vmem>>, %arg5: memref<1x128xf32, #tpu.memory_space<vmem>>, %arg6: memref<1x128xf32, #tpu.memory_space<vmem>>, %arg7: memref<64x128xbf16, #tpu.memory_space<vmem>>) attributes {dimension_semantics = [#tpu.dimension_semantics<parallel>], iteration_bounds = array<i64: 2>, scalar_prefetch = 0 : i64, scratch_operands = 0 : i64, tpu.core_type = #tpu.core_type<tc>, window_params = [{transform_indices = @transform_0, window_bounds = array<i64: 64, 128>}, {transform_indices = @transform_1, window_bounds = array<i64: 64, 128>}, {pipeline_mode = #tpu.pipeline_mode<synchronous>, transform_indices = @transform_2, window_bounds = array<i64: 1, 128>}, {pipeline_mode = #tpu.pipeline_mode<synchronous>, transform_indices = @transform_3, window_bounds = array<i64: 1, 128>}, {pipeline_mode = #tpu.pipeline_mode<synchronous>, transform_indices = @transform_4, window_bounds = array<i64: 1, 128>}, {pipeline_mode = #tpu.pipeline_mode<synchronous>, transform_indices = @transform_5, window_bounds = array<i64: 1, 128>}, {transform_indices = @transform_6, window_bounds = array<i64: 64, 128>}]} {
    %c0 = arith.constant 0 : index
    %c0_0 = arith.constant 0 : index
    %0 = vector.load %arg1[%c0, %c0_0] : memref<64x128xf32, #tpu.memory_space<vmem>>, vector<64x128xf32>
    %c0_1 = arith.constant 0 : index
    %c0_2 = arith.constant 0 : index
    %1 = vector.load %arg3[%c0_1, %c0_2] : memref<1x128xf32, #tpu.memory_space<vmem>>, vector<1x128xf32>
    %2 = vector.broadcast %1 : vector<1x128xf32> to vector<64x128xf32>
    %3 = arith.mulf %0, %2 : vector<64x128xf32>
    %c0_3 = arith.constant 0 : index
    %c0_4 = arith.constant 0 : index
    %4 = vector.load %arg4[%c0_3, %c0_4] : memref<1x128xf32, #tpu.memory_space<vmem>>, vector<1x128xf32>
    %5 = vector.broadcast %4 : vector<1x128xf32> to vector<64x128xf32>
    %6 = arith.addf %3, %5 : vector<64x128xf32>
    %c0_5 = arith.constant 0 : index
    %c0_6 = arith.constant 0 : index
    %7 = vector.load %arg2[%c0_5, %c0_6] : memref<64x128xf32, #tpu.memory_space<vmem>>, vector<64x128xf32>
    %c0_7 = arith.constant 0 : index
    %c0_8 = arith.constant 0 : index
    %8 = vector.load %arg5[%c0_7, %c0_8] : memref<1x128xf32, #tpu.memory_space<vmem>>, vector<1x128xf32>
    %9 = vector.broadcast %8 : vector<1x128xf32> to vector<64x128xf32>
    %10 = arith.mulf %7, %9 : vector<64x128xf32>
    %11 = arith.addf %6, %10 : vector<64x128xf32>
    %c0_9 = arith.constant 0 : index
    %c0_10 = arith.constant 0 : index
    %12 = vector.load %arg6[%c0_9, %c0_10] : memref<1x128xf32, #tpu.memory_space<vmem>>, vector<1x128xf32>
    %13 = vector.broadcast %12 : vector<1x128xf32> to vector<64x128xf32>
    %14 = arith.addf %11, %13 : vector<64x128xf32>
    %cst = arith.constant 0.000000e+00 : f32
    %15 = vector.broadcast %cst : f32 to vector<64x128xf32>
    %16 = arith.maximumf %14, %15 : vector<64x128xf32>
    %17 = arith.truncf %16 : vector<64x128xf32> to vector<64x128xbf16>
    %c0_11 = arith.constant 0 : index
    %c0_12 = arith.constant 0 : index
    %18 = vector.load %arg7[%c0_11, %c0_12] : memref<64x128xbf16, #tpu.memory_space<vmem>>, vector<64x128xbf16>
    tpu.vector_store %arg7[%c0_11, %c0_12], %17 {strides = array<i32>} : memref<64x128xbf16, #tpu.memory_space<vmem>>, vector<64x128xbf16>,
    return
  }
  func.func @transform_0(%arg0: i32) -> (i32, i32) {
    %c0_i32 = arith.constant 0 : i32
    %c0_i32_0 = arith.constant 0 : i32
    return %arg0, %c0_i32 : i32, i32
  }
  func.func @transform_1(%arg0: i32) -> (i32, i32) {
    %c0_i32 = arith.constant 0 : i32
    %c0_i32_0 = arith.constant 0 : i32
    return %arg0, %c0_i32 : i32, i32
  }
  func.func @transform_2(%arg0: i32) -> (i32, i32) {
    %c0_i32 = arith.constant 0 : i32
    %c0_i32_0 = arith.constant 0 : i32
    %c0_i32_1 = arith.constant 0 : i32
    return %c0_i32, %c0_i32_0 : i32, i32
  }
  func.func @transform_3(%arg0: i32) -> (i32, i32) {
    %c0_i32 = arith.constant 0 : i32
    %c0_i32_0 = arith.constant 0 : i32
    %c0_i32_1 = arith.constant 0 : i32
    return %c0_i32, %c0_i32_0 : i32, i32
  }
  func.func @transform_4(%arg0: i32) -> (i32, i32) {
    %c0_i32 = arith.constant 0 : i32
    %c0_i32_0 = arith.constant 0 : i32
    %c0_i32_1 = arith.constant 0 : i32
    return %c0_i32, %c0_i32_0 : i32, i32
  }
  func.func @transform_5(%arg0: i32) -> (i32, i32) {
    %c0_i32 = arith.constant 0 : i32
    %c0_i32_0 = arith.constant 0 : i32
    %c0_i32_1 = arith.constant 0 : i32
    return %c0_i32, %c0_i32_0 : i32, i32
  }
  func.func @transform_6(%arg0: i32) -> (i32, i32) {
    %c0_i32 = arith.constant 0 : i32
    %c0_i32_0 = arith.constant 0 : i32
    return %arg0, %c0_i32 : i32, i32
  }
}

</mosaic_0001>

<llo_original>
// kernel: _lambda_.3
$region0: #{_lambda_.3}
  #allocation0 [shape = 'u32[]', space=smem, size = 0x4, offset = 0x4, fixed_abs, tag = 'smem constant byte address 0x4 - core index']
  #allocation1 [shape = 'u32[144,128]{1,0:T(1,128)}', space=vmem, size = 0x12000, scoped, tag = 'internal scratch']
  %s0 = inlined_call_operand.vmem [shape: bf16[128,128], index: 0, kind: input, shape index: {}]
  %s1 = inlined_call_operand.vmem [shape: bf16[128,256], index: 1, kind: input, shape index: {}]
  %s2 = inlined_call_operand.vmem [shape: f32[128,256], index: 2, kind: output, shape index: {0}]
  %s3 = inlined_call_operand.vmem [shape: f32[16,256], index: 3, kind: output, shape index: {1}]
  %4 = xla_tuple %s2, %s3
  %s5 = sld [smem:[#allocation0]]
  $region49: #{_lambda_.3} parent=0
    _
  %s7 = ssub.s32 1, %s5
  %s8 = scalar_select 0, %s7, %s5
  loop: start=0, step=1, limit=4
  $region2: #{_lambda_.3} parent=0 // loop_pre_header
    _
  $region3: #{_lambda_.3} parent=0 // loop_header
    %s10 = sphi 0, %s14
    %p11 = scmp.ge.s32.totalorder %s10, 4
    %s20 = sphi 0, %s22
    %s23 = sphi 0, %s20
    %s24 = sphi 0, %s23
    %s40 = sphi 0, %s24
    %s44 = sphi 0, %s44
    %s46 = sphi 0, %s44
    %s47 = sphi 0, %s46
    %s61 = sphi 0, %s47
    %s67 = sphi 0, %s69
    %s70 = sphi 0, %s67
    %s71 = sphi 0, %s70
    %s87 = sphi 0, %s71
    %s93 = sphi 0, %s95
    %s96 = sphi 0, %s93
    %s97 = sphi 0, %s96
    %s113 = sphi 0, %s97
  $region4: #{_lambda_.3} parent=0 // loop_header_branch
    %13 = sbr.rel (%p11) target = $region8
  $region5: #{_lambda_.3} parent=0 // loop_body
    %s15 = ssub.s32 %s10, 1
    %s16 = ssub.s32 %s10, 2
    %s17 = sadd.s32 %s10, 1
    %s18 = ssub.s32 %s10, %s17
    %p19 = scmp.eq.s32.totalorder %s18, 0
    %s21 = sadd.s32 %s20, 1
    %s22 = scalar_select %p19, %s20, %s21
    %p25 = pneg %p19
    %p26 = scmp.eq.s32.totalorder %s10, 1
    %p27 = por %p25, %p26
    %p28 = scmp.ne.s32.totalorder %s20, %s23
    %p29 = scmp.eq.s32.totalorder %s10, 0
    %p30 = por %p28, %p29
    %p31 = scmp.ne.s32.totalorder %s20, %s23
    %p32 = scmp.eq.s32.totalorder %s15, 1
    %p33 = por %p31, %p32
    %p34 = scmp.ne.s32.totalorder %s23, %s24
    %p35 = scmp.eq.s32.totalorder %s15, 0
    %p36 = por %p34, %p35
    %p37 = scmp.ne.s32.totalorder %s23, %s24
    %p38 = scmp.eq.s32.totalorder %s16, 1
    %p39 = por %p37, %p38
    %p41 = scmp.ne.s32.totalorder %s24, %s40
    %p42 = scmp.eq.s32.totalorder %s16, 0
    %p43 = por %p41, %p42
    %s45 = sadd.s32 %s44, 1
    %p48 = scmp.eq.s32.totalorder %s10, 1
    %p49 = scmp.ne.s32.totalorder %s44, %s46
    %p50 = scmp.eq.s32.totalorder %s10, 0
    %p51 = por %p49, %p50
    %p52 = scmp.ne.s32.totalorder %s44, %s46
    %p53 = scmp.eq.s32.totalorder %s15, 1
    %p54 = por %p52, %p53
    %p55 = scmp.ne.s32.totalorder %s46, %s47
    %p56 = scmp.eq.s32.totalorder %s15, 0
    %p57 = por %p55, %p56
    %p58 = scmp.ne.s32.totalorder %s46, %s47
    %p59 = scmp.eq.s32.totalorder %s16, 1
    %p60 = por %p58, %p59
    %p62 = scmp.ne.s32.totalorder %s47, %s61
    %p63 = scmp.eq.s32.totalorder %s16, 0
    %p64 = por %p62, %p63
    %s65 = ssub.s32 %s10, %s17
    %p66 = scmp.eq.s32.totalorder %s65, 0
    %s68 = sadd.s32 %s67, 1
    %s69 = scalar_select %p66, %s67, %s68
    %p72 = pneg %p66
    %p73 = scmp.eq.s32.totalorder %s10, 1
    %p74 = por %p72, %p73
    %p75 = scmp.ne.s32.totalorder %s67, %s70
    %p76 = scmp.eq.s32.totalorder %s10, 0
    %p77 = por %p75, %p76
    %p78 = scmp.ne.s32.totalorder %s67, %s70
    %p79 = scmp.eq.s32.totalorder %s15, 1
    %p80 = por %p78, %p79
    %p81 = scmp.ne.s32.totalorder %s70, %s71
    %p82 = scmp.eq.s32.totalorder %s15, 0
    %p83 = por %p81, %p82
    %p84 = scmp.ne.s32.totalorder %s70, %s71
    %p85 = scmp.eq.s32.totalorder %s16, 1
    %p86 = por %p84, %p85
    %p88 = scmp.ne.s32.totalorder %s71, %s87
    %p89 = scmp.eq.s32.totalorder %s16, 0
    %p90 = por %p88, %p89
    %s91 = ssub.s32 %s10, %s17
    %p92 = scmp.eq.s32.totalorder %s91, 0
    %s94 = sadd.s32 %s93, 1
    %s95 = scalar_select %p92, %s93, %s94
    %p98 = pneg %p92
    %p99 = scmp.eq.s32.totalorder %s10, 1
    %p100 = por %p98, %p99
    %p101 = scmp.ne.s32.totalorder %s93, %s96
    %p102 = scmp.eq.s32.totalorder %s10, 0
    %p103 = por %p101, %p102
    %p104 = scmp.ne.s32.totalorder %s93, %s96
    %p105 = scmp.eq.s32.totalorder %s15, 1
    %p106 = por %p104, %p105
    %p107 = scmp.ne.s32.totalorder %s96, %s97
    %p108 = scmp.eq.s32.totalorder %s15, 0
    %p109 = por %p107, %p108
    %p110 = scmp.ne.s32.totalorder %s96, %s97
    %p111 = scmp.eq.s32.totalorder %s16, 1
    %p112 = por %p110, %p111
    %p114 = scmp.ne.s32.totalorder %s97, %s113
    %p115 = scmp.eq.s32.totalorder %s16, 0
    %p116 = por %p114, %p115
    %p117 = scmp.le.s32.totalorder 1, %s10
    %p118 = scmp.lt.s32.totalorder %s10, 3
    %p119 = pnand %p117, %p118
    %p120 = pneg %p119
    // Predicated region
    $region9: #{_lambda_.3} parent=5 // pred_check
      _
    $region10: #{_lambda_.3} parent=5 // pred_check_branch
      %122 = sbr.rel (%p119) target = $region12
    $region11: #{_lambda_.3} parent=5 // pred_region
      %s123 = ssub.s32 %s10, 1
      // Predicated region
      $region13: #{_lambda_.3} parent=11 // pred_check
        %p124 = pneg %p57
      $region14: #{_lambda_.3} parent=11 // pred_check_branch
        %126 = sbr.rel (%p124) target = $region16
      $region15: #{_lambda_.3} parent=11 // pred_region
        _
      $region16: #{_lambda_.3} parent=11 // pred_fallthru
        _
    $region12: #{_lambda_.3} parent=5 // pred_fallthru
      _
    %p127 = scmp.lt.s32.totalorder %s10, 2
    // Predicated region
    $region17: #{_lambda_.3} parent=5 // pred_check
      %p128 = pneg %p127
    $region18: #{_lambda_.3} parent=5 // pred_check_branch
      %130 = sbr.rel (%p128) target = $region20
    $region19: #{_lambda_.3} parent=5 // pred_region
      // Predicated region
      $region21: #{_lambda_.3} parent=19 // pred_check
        %p131 = pneg %p30
      $region22: #{_lambda_.3} parent=19 // pred_check_branch
        %133 = sbr.rel (%p131) target = $region24
      $region23: #{_lambda_.3} parent=19 // pred_region
        %s134 = smul.u32 8, %s10
        %p135 = scmp.lt.s32.totalorder %s134, 15
        %s136 = scalar_select %p135, %s134, 15
        %s137 = smul.addr %s136, 4
        %s138 = scalar_lea.vmem %s0, %s137
        %s139 = smul.u32 8, %s10
      $region24: #{_lambda_.3} parent=19 // pred_fallthru
        _
    $region20: #{_lambda_.3} parent=5 // pred_fallthru
      _
    %p140 = scmp.le.s32.totalorder 1, %s10
    %p141 = scmp.lt.s32.totalorder %s10, 3
    %p142 = pnand %p140, %p141
    %p143 = pneg %p142
    // Predicated region
    $region25: #{_lambda_.3} parent=5 // pred_check
      _
    $region26: #{_lambda_.3} parent=5 // pred_check_branch
      %145 = sbr.rel (%p142) target = $region28
    $region27: #{_lambda_.3} parent=5 // pred_region
      %s146 = ssub.s32 %s10, 1
      %s147 = smul.u32 8, %s15
      %p148 = scmp.lt.s32.totalorder %s147, 15
      %s149 = scalar_select %p148, %s147, 15
      %s150 = smul.addr %s149, 4
      %s151 = scalar_lea.vmem %s0, %s150
      %p152 = pneg %p36
      %p153 = pneg %p33
      %p154 = pneg %p57
      %p155 = pneg %p54
      %p156 = pneg %p83
      %p157 = pneg %p80
      %s158 = smul.u32 8, %s15
      %p159 = scmp.lt.s32.totalorder %s158, 15
      %s160 = scalar_select %p159, %s158, 15
      %s161 = smul.addr %s160, 2
      %s162 = smul.addr %s161, 8
      %s163 = scalar_lea.vmem %s2, %s162
      %p164 = pneg %p109
      %p165 = pneg %p106
      %p166 = scmp.lt.s32.totalorder %s15, 1
      %s167 = scalar_select %p166, %s15, 1
      %s168 = smul.addr %s167, 2
      %s169 = smul.addr %s168, 8
      %s170 = scalar_lea.vmem %s3, %s169
      %s171 = smul.u32 8, %s15
      %p172 = scmp.lt.s32.totalorder %s171, 15
      %s173 = scalar_select %p172, %s171, 15
      %s174 = smul.addr %s173, 4
      %s175 = scalar_lea.vmem %s0, %s174
      %s176 = smul.u32 8, %s15
      %s177 = smul.u32 8, %s15
      %p178 = scmp.lt.s32.totalorder %s177, 15
      %s179 = scalar_select %p178, %s177, 15
      %s180 = smul.addr %s179, 2
      %s181 = smul.addr %s180, 8
      %s182 = scalar_lea.vmem %s2, %s181
      %s183 = smul.u32 8, %s15
      %p184 = scmp.lt.s32.totalorder %s15, 1
      %s185 = scalar_select %p184, %s15, 1
      %s186 = smul.addr %s185, 2
      %s187 = smul.addr %s186, 8
      %s188 = scalar_lea.vmem %s3, %s187
      %v190 = vld [vmem:[%s175] sm:$0xf]
      %v191 = vld [vmem:[%s175 + $0x4] sm:$0xf]
      %v192 = vld [vmem:[%s175 + $0x8] sm:$0xf]
      %v193 = vld [vmem:[%s175 + $0xc] sm:$0xf]
      %v194 = vld [vmem:[%s175 + $0x10] sm:$0xf]
      %v195 = vld [vmem:[%s175 + $0x14] sm:$0xf]
      %v196 = vld [vmem:[%s175 + $0x18] sm:$0xf]
      %v197 = vld [vmem:[%s175 + $0x1c] sm:$0xf]
      %v198 = vld [vmem:[%s1] sm:$0xff]
      %v199 = vld [vmem:[%s1 + $0x8] sm:$0xff]
      %v200 = vld [vmem:[%s1 + $0x10] sm:$0xff]
      %v201 = vld [vmem:[%s1 + $0x18] sm:$0xff]
      %v202 = vld [vmem:[%s1 + $0x20] sm:$0xff]
      %v203 = vld [vmem:[%s1 + $0x28] sm:$0xff]
      %v204 = vld [vmem:[%s1 + $0x30] sm:$0xff]
      %v205 = vld [vmem:[%s1 + $0x38] sm:$0xff]
      %v206 = vld [vmem:[%s1 + $0x40] sm:$0xff]
      %v207 = vld [vmem:[%s1 + $0x48] sm:$0xff]
      %v208 = vld [vmem:[%s1 + $0x50] sm:$0xff]
      %v209 = vld [vmem:[%s1 + $0x58] sm:$0xff]
      %v210 = vld [vmem:[%s1 + $0x60] sm:$0xff]
      %v211 = vld [vmem:[%s1 + $0x68] sm:$0xff]
      %v212 = vld [vmem:[%s1 + $0x70] sm:$0xff]
      %v213 = vld [vmem:[%s1 + $0x78] sm:$0xff]
      %v222 = vunpack.c.l.b16 %v190
      %v223 = vunpack.c.l.b16 %v191
      %v224 = vunpack.c.l.b16 %v192
      %v225 = vunpack.c.l.b16 %v193
      %v226 = vunpack.c.l.b16 %v194
      %v227 = vunpack.c.l.b16 %v195
      %v228 = vunpack.c.l.b16 %v196
      %v229 = vunpack.c.l.b16 %v197
      %v230 = vpack.c.b16 %v223, %v222
      %v231 = vpack.c.b16 %v225, %v224
      %v232 = vpack.c.b16 %v227, %v226
      %v233 = vpack.c.b16 %v229, %v228
      %v254 = vunpack.c.l.b16 %v198
      %v255 = vunpack.c.h.b16 %v198
      %v256 = vunpack.c.l.b16 %v199
      %v257 = vunpack.c.h.b16 %v199
      %v258 = vunpack.c.l.b16 %v200
      %v259 = vunpack.c.h.b16 %v200
      %v260 = vunpack.c.l.b16 %v201
      %v261 = vunpack.c.h.b16 %v201
      %v262 = vunpack.c.l.b16 %v202
      %v263 = vunpack.c.h.b16 %v202
      %v264 = vunpack.c.l.b16 %v203
      %v265 = vunpack.c.h.b16 %v203
      %v266 = vunpack.c.l.b16 %v204
      %v267 = vunpack.c.h.b16 %v204
      %v268 = vunpack.c.l.b16 %v205
      %v269 = vunpack.c.h.b16 %v205
      %v270 = vunpack.c.l.b16 %v206
      %v271 = vunpack.c.h.b16 %v206
      %v272 = vunpack.c.l.b16 %v207
      %v273 = vunpack.c.h.b16 %v207
      %v274 = vunpack.c.l.b16 %v208
      %v275 = vunpack.c.h.b16 %v208
      %v276 = vunpack.c.l.b16 %v209
      %v277 = vunpack.c.h.b16 %v209
      %v278 = vunpack.c.l.b16 %v210
      %v279 = vunpack.c.h.b16 %v210
      %v280 = vunpack.c.l.b16 %v211
      %v281 = vunpack.c.h.b16 %v211
      %v282 = vunpack.c.l.b16 %v212
      %v283 = vunpack.c.h.b16 %v212
      %v284 = vunpack.c.l.b16 %v213
      %v285 = vunpack.c.h.b16 %v213
      %v286 = vpack.c.b16 %v256, %v254
      %v287 = vpack.c.b16 %v257, %v255
      %v288 = vpack.c.b16 %v260, %v258
      %v289 = vpack.c.b16 %v261, %v259
      %v290 = vpack.c.b16 %v264, %v262
      %v291 = vpack.c.b16 %v265, %v263
      %v292 = vpack.c.b16 %v268, %v266
      %v293 = vpack.c.b16 %v269, %v267
      %v294 = vpack.c.b16 %v272, %v270
      %v295 = vpack.c.b16 %v273, %v271
      %v296 = vpack.c.b16 %v276, %v274
      %v297 = vpack.c.b16 %v277, %v275
      %v298 = vpack.c.b16 %v280, %v278
      %v299 = vpack.c.b16 %v281, %v279
      %v300 = vpack.c.b16 %v284, %v282
      %v301 = vpack.c.b16 %v285, %v283
      %318 = vmatprep.subr.bf16.mxu0 %v301
      %319 = vmatpush1.bf16.msra.mxu0 %v300
      %320 = vmatprep.subr.bf16.mxu0 %v299
      %321 = vmatpush1.bf16.msra.mxu0 %v298
      %322 = vmatprep.subr.bf16.mxu0 %v297
      %323 = vmatpush1.bf16.msra.mxu0 %v296
      %324 = vmatprep.subr.bf16.mxu0 %v295
      %325 = vmatpush1.bf16.msra.mxu0 %v294
      %326 = vmatprep.subr.bf16.mxu0 %v293
      %327 = vmatpush1.bf16.msra.mxu0 %v292
      %328 = vmatprep.subr.bf16.mxu0 %v291
      %329 = vmatpush1.bf16.msra.mxu0 %v290
      %330 = vmatprep.subr.bf16.mxu0 %v289
      %331 = vmatpush1.bf16.msra.mxu0 %v288
      %332 = vmatprep.subr.bf16.mxu0 %v287
      %333 = vmatpush1.bf16.msra.mxu0 %v286
      %334 = vmatprep.subr.bf16.mxu0 0
      %335 = vmatpush2.bf16.msra.mxu0 0
      %336 = vmatprep.subr.bf16.mxu0 0
      %337 = vmatpush2.bf16.msra.mxu0 0
      %338 = vmatprep.subr.bf16.mxu0 0
      %339 = vmatpush2.bf16.msra.mxu0 0
      %340 = vmatprep.subr.bf16.mxu0 0
      %341 = vmatpush2.bf16.msra.mxu0 0
      %342 = vmatprep.subr.bf16.mxu0 0
      %343 = vmatpush2.bf16.msra.mxu0 0
      %344 = vmatprep.subr.bf16.mxu0 0
      %345 = vmatpush2.bf16.msra.mxu0 0
      %346 = vmatprep.subr.bf16.mxu0 0
      %347 = vmatpush2.bf16.msra.mxu0 0
      %348 = vmatprep.subr.bf16.mxu0 0
      %349 = vmatpush2.bf16.msra.mxu0 0
      %350 = vmatprep.mubr.bf16.mxu0 0
      %351 = vmatmul.mubr.bf16.gmra.mxu0 %v230
      %v352 = vpop.f32.mrf.mxu0
      %v353 = vadd.f32 0.0, %v352
      %v354 = vpop.f32.mrf.mxu0
      %v355 = vadd.f32 0.0, %v354
      %v356 = vpop.f32.mrf.mxu0
      %v357 = vadd.f32 0.0, %v356
      %v358 = vpop.f32.mrf.mxu0
      %v359 = vadd.f32 0.0, %v358
      %360 = vmatprep.mubr.bf16.mxu0 0
      %361 = vmatmul.mubr.bf16.gmra.mxu0 %v231
      %v362 = vpop.f32.mrf.mxu0
      %v363 = vadd.f32 0.0, %v362
      %v364 = vpop.f32.mrf.mxu0
      %v365 = vadd.f32 0.0, %v364
      %v366 = vpop.f32.mrf.mxu0
      %v367 = vadd.f32 0.0, %v366
      %v368 = vpop.f32.mrf.mxu0
      %v369 = vadd.f32 0.0, %v368
      %370 = vmatprep.mubr.bf16.mxu0 0
      %371 = vmatmul.mubr.bf16.gmra.mxu0 %v232
      %v372 = vpop.f32.mrf.mxu0
      %v373 = vadd.f32 0.0, %v372
      %v374 = vpop.f32.mrf.mxu0
      %v375 = vadd.f32 0.0, %v374
      %v376 = vpop.f32.mrf.mxu0
      %v377 = vadd.f32 0.0, %v376
      %v378 = vpop.f32.mrf.mxu0
      %v379 = vadd.f32 0.0, %v378
      %380 = vmatprep.mubr.bf16.mxu0 0
      %381 = vmatmul.mubr.bf16.gmra.mxu0 %v233
      %v382 = vpop.f32.mrf.mxu0
      %v383 = vadd.f32 0.0, %v382
      %v384 = vpop.f32.mrf.mxu0
      %v385 = vadd.f32 0.0, %v384
      %v386 = vpop.f32.mrf.mxu0
      %v387 = vadd.f32 0.0, %v386
      %v388 = vpop.f32.mrf.mxu0
      %v389 = vadd.f32 0.0, %v388
      %390 = vdwg.mxu0
      %391 = vst [vmem:[%s182] sm:$0xff] %v353
      %392 = vst [vmem:[%s182 + $0x8] sm:$0xff] %v355
      %393 = vst [vmem:[%s182 + $0x10] sm:$0xff] %v357
      %394 = vst [vmem:[%s182 + $0x18] sm:$0xff] %v359
      %395 = vst [vmem:[%s182 + $0x20] sm:$0xff] %v363
      %396 = vst [vmem:[%s182 + $0x28] sm:$0xff] %v365
      %397 = vst [vmem:[%s182 + $0x30] sm:$0xff] %v367
      %398 = vst [vmem:[%s182 + $0x38] sm:$0xff] %v369
      %399 = vst [vmem:[%s182 + $0x40] sm:$0xff] %v373
      %400 = vst [vmem:[%s182 + $0x48] sm:$0xff] %v375
      %401 = vst [vmem:[%s182 + $0x50] sm:$0xff] %v377
      %402 = vst [vmem:[%s182 + $0x58] sm:$0xff] %v379
      %403 = vst [vmem:[%s182 + $0x60] sm:$0xff] %v383
      %404 = vst [vmem:[%s182 + $0x68] sm:$0xff] %v385
      %405 = vst [vmem:[%s182 + $0x70] sm:$0xff] %v387
      %406 = vst [vmem:[%s182 + $0x78] sm:$0xff] %v389
      %v407 = vadd.f32 %v353, %v357
      %v408 = vadd.f32 %v407, %v363
      %v409 = vadd.f32 %v408, %v367
      %v410 = vadd.f32 %v409, %v373
      %v411 = vadd.f32 %v410, %v377
      %v412 = vadd.f32 %v411, %v383
      %v413 = vadd.f32 %v412, %v387
      %v414 = vrot.slane %v413, 4
      %v415 = vadd.f32 %v413, %v414
      %v416 = vrot.slane %v415, 2
      %v417 = vadd.f32 %v415, %v416
      %v418 = vrot.slane %v417, 1
      %v419 = vadd.f32 %v417, %v418
      %v420 = vadd.f32 %v355, %v359
      %v421 = vadd.f32 %v420, %v365
      %v422 = vadd.f32 %v421, %v369
      %v423 = vadd.f32 %v422, %v375
      %v424 = vadd.f32 %v423, %v379
      %v425 = vadd.f32 %v424, %v385
      %v426 = vadd.f32 %v425, %v389
      %v427 = vrot.slane %v426, 4
      %v428 = vadd.f32 %v426, %v427
      %v429 = vrot.slane %v428, 2
      %v430 = vadd.f32 %v428, %v429
      %v431 = vrot.slane %v430, 1
      %v432 = vadd.f32 %v430, %v431
      %v433 = vmul.f32 %v353, %v353
      %v434 = vmul.f32 %v355, %v355
      %v435 = vmul.f32 %v357, %v357
      %v436 = vmul.f32 %v359, %v359
      %v437 = vmul.f32 %v363, %v363
      %v438 = vmul.f32 %v365, %v365
      %v439 = vmul.f32 %v367, %v367
      %v440 = vmul.f32 %v369, %v369
      %v441 = vmul.f32 %v373, %v373
      %v442 = vmul.f32 %v375, %v375
      %v443 = vmul.f32 %v377, %v377
      %v444 = vmul.f32 %v379, %v379
      %v445 = vmul.f32 %v383, %v383
      %v446 = vmul.f32 %v385, %v385
      %v447 = vmul.f32 %v387, %v387
      %v448 = vmul.f32 %v389, %v389
      %v449 = vadd.f32 %v433, %v435
      %v450 = vadd.f32 %v449, %v437
      %v451 = vadd.f32 %v450, %v439
      %v452 = vadd.f32 %v451, %v441
      %v453 = vadd.f32 %v452, %v443
      %v454 = vadd.f32 %v453, %v445
      %v455 = vadd.f32 %v454, %v447
      %v456 = vrot.slane %v455, 4
      %v457 = vadd.f32 %v455, %v456
      %v458 = vrot.slane %v457, 2
      %v459 = vadd.f32 %v457, %v458
      %v460 = vrot.slane %v459, 1
      %v461 = vadd.f32 %v459, %v460
      %v462 = vadd.f32 %v434, %v436
      %v463 = vadd.f32 %v462, %v438
      %v464 = vadd.f32 %v463, %v440
      %v465 = vadd.f32 %v464, %v442
      %v466 = vadd.f32 %v465, %v444
      %v467 = vadd.f32 %v466, %v446
      %v468 = vadd.f32 %v467, %v448
      %v469 = vrot.slane %v468, 4
      %v470 = vadd.f32 %v468, %v469
      %v471 = vrot.slane %v470, 2
      %v472 = vadd.f32 %v470, %v471
      %v473 = vrot.slane %v472, 1
      %v474 = vadd.f32 %v472, %v473
      %vm475 = vcmask 1040384
      %v476 = vsel %vm475, %v419, %v461
      %v477 = vsel %vm475, %v432, %v474
      %vm478 = vcmask 1041408
      %v479 = vsel %vm478, %v476, 0.0
      %v480 = vsel %vm478, %v477, 0.0
      %481 = vst [vmem:[%s188] sm:$0xff] %v479
      %482 = vst [vmem:[%s188 + $0x8] sm:$0xff] %v480
      %s483 = smul.u32 8, %s15
      %p484 = scmp.lt.s32.totalorder %s483, 15
      %s485 = scalar_select %p484, %s483, 15
      %s486 = smul.addr %s485, 2
      %s487 = smul.addr %s486, 8
      %s488 = scalar_lea.vmem %s2, %s487
      %p489 = scmp.lt.s32.totalorder %s15, 1
      %s490 = scalar_select %p489, %s15, 1
      %s491 = smul.addr %s490, 2
      %s492 = smul.addr %s491, 8
      %s493 = scalar_lea.vmem %s3, %s492
      // Predicated region
      $region29: #{_lambda_.3} parent=27 // pred_check
        %p494 = pneg %p80
      $region30: #{_lambda_.3} parent=27 // pred_check_branch
        %496 = sbr.rel (%p494) target = $region32
      $region31: #{_lambda_.3} parent=27 // pred_region
        %s497 = smul.u32 8, %s15
      $region32: #{_lambda_.3} parent=27 // pred_fallthru
        _
      // Predicated region
      $region33: #{_lambda_.3} parent=27 // pred_check
        %p498 = pneg %p106
      $region34: #{_lambda_.3} parent=27 // pred_check_branch
        %500 = sbr.rel (%p498) target = $region36
      $region35: #{_lambda_.3} parent=27 // pred_region
        _
      $region36: #{_lambda_.3} parent=27 // pred_fallthru
        _
    $region28: #{_lambda_.3} parent=5 // pred_fallthru
      _
    %p501 = scmp.le.s32.totalorder 2, %s10
    // Predicated region
    $region37: #{_lambda_.3} parent=5 // pred_check
      %p502 = pneg %p501
    $region38: #{_lambda_.3} parent=5 // pred_check_branch
      %504 = sbr.rel (%p502) target = $region40
    $region39: #{_lambda_.3} parent=5 // pred_region
      %s505 = ssub.s32 %s10, 2
      // Predicated region
      $region41: #{_lambda_.3} parent=39 // pred_check
        %p506 = pneg %p86
      $region42: #{_lambda_.3} parent=39 // pred_check_branch
        %508 = sbr.rel (%p506) target = $region44
      $region43: #{_lambda_.3} parent=39 // pred_region
        %s509 = smul.u32 8, %s16
        %p510 = scmp.lt.s32.totalorder %s509, 15
        %s511 = scalar_select %p510, %s509, 15
        %s512 = smul.addr %s511, 2
        %s513 = smul.addr %s512, 8
        %s514 = scalar_lea.vmem %s2, %s513
      $region44: #{_lambda_.3} parent=39 // pred_fallthru
        _
      // Predicated region
      $region45: #{_lambda_.3} parent=39 // pred_check
        %p515 = pneg %p112
      $region46: #{_lambda_.3} parent=39 // pred_check_branch
        %517 = sbr.rel (%p515) target = $region48
      $region47: #{_lambda_.3} parent=39 // pred_region
        %p518 = scmp.lt.s32.totalorder %s16, 1
        %s519 = scalar_select %p518, %s16, 1
        %s520 = smul.addr %s519, 2
        %s521 = smul.addr %s520, 8
        %s522 = scalar_lea.vmem %s3, %s521
      $region48: #{_lambda_.3} parent=39 // pred_fallthru
        _
    $region40: #{_lambda_.3} parent=5 // pred_fallthru
      _
  $region6: #{_lambda_.3} parent=0 // loop_footer
    %s14 = sadd.s32 1, %s10
  $region7: #{_lambda_.3} parent=0 // loop_footer_branch
    %9 = sbr.rel target = $region3
  $region8: #{_lambda_.3} parent=0 // loop_exit
    _

// kernel: _lambda_.4
$region0: #{_lambda_.4}
  #allocation0 [shape = 'u32[]', space=smem, size = 0x4, offset = 0x4, fixed_abs, tag = 'smem constant byte address 0x4 - core index']
  #allocation1 [shape = 'u32[144,128]{1,0:T(1,128)}', space=vmem, size = 0x12000, scoped, tag = 'internal scratch']
  %s0 = inlined_call_operand.vmem [shape: bf16[128,128], index: 0, kind: input, shape index: {}]
  %s1 = inlined_call_operand.vmem [shape: bf16[128,128], index: 1, kind: input, shape index: {}]
  %s2 = inlined_call_operand.vmem [shape: f32[128,128], index: 2, kind: output, shape index: {0}]
  %s3 = inlined_call_operand.vmem [shape: f32[16,128], index: 3, kind: output, shape index: {1}]
  %4 = xla_tuple %s2, %s3
  %s5 = sld [smem:[#allocation0]]
  $region49: #{_lambda_.4} parent=0
    _
  %s7 = ssub.s32 1, %s5
  %s8 = scalar_select 0, %s7, %s5
  loop: start=0, step=1, limit=4
  $region2: #{_lambda_.4} parent=0 // loop_pre_header
    _
  $region3: #{_lambda_.4} parent=0 // loop_header
    %s10 = sphi 0, %s14
    %p11 = scmp.ge.s32.totalorder %s10, 4
    %s20 = sphi 0, %s22
    %s23 = sphi 0, %s20
    %s24 = sphi 0, %s23
    %s40 = sphi 0, %s24
    %s44 = sphi 0, %s44
    %s46 = sphi 0, %s44
    %s47 = sphi 0, %s46
    %s61 = sphi 0, %s47
    %s67 = sphi 0, %s69
    %s70 = sphi 0, %s67
    %s71 = sphi 0, %s70
    %s87 = sphi 0, %s71
    %s93 = sphi 0, %s95
    %s96 = sphi 0, %s93
    %s97 = sphi 0, %s96
    %s113 = sphi 0, %s97
  $region4: #{_lambda_.4} parent=0 // loop_header_branch
    %13 = sbr.rel (%p11) target = $region8
  $region5: #{_lambda_.4} parent=0 // loop_body
    %s15 = ssub.s32 %s10, 1
    %s16 = ssub.s32 %s10, 2
    %s17 = sadd.s32 %s10, 1
    %s18 = ssub.s32 %s10, %s17
    %p19 = scmp.eq.s32.totalorder %s18, 0
    %s21 = sadd.s32 %s20, 1
    %s22 = scalar_select %p19, %s20, %s21
    %p25 = pneg %p19
    %p26 = scmp.eq.s32.totalorder %s10, 1
    %p27 = por %p25, %p26
    %p28 = scmp.ne.s32.totalorder %s20, %s23
    %p29 = scmp.eq.s32.totalorder %s10, 0
    %p30 = por %p28, %p29
    %p31 = scmp.ne.s32.totalorder %s20, %s23
    %p32 = scmp.eq.s32.totalorder %s15, 1
    %p33 = por %p31, %p32
    %p34 = scmp.ne.s32.totalorder %s23, %s24
    %p35 = scmp.eq.s32.totalorder %s15, 0
    %p36 = por %p34, %p35
    %p37 = scmp.ne.s32.totalorder %s23, %s24
    %p38 = scmp.eq.s32.totalorder %s16, 1
    %p39 = por %p37, %p38
    %p41 = scmp.ne.s32.totalorder %s24, %s40
    %p42 = scmp.eq.s32.totalorder %s16, 0
    %p43 = por %p41, %p42
    %s45 = sadd.s32 %s44, 1
    %p48 = scmp.eq.s32.totalorder %s10, 1
    %p49 = scmp.ne.s32.totalorder %s44, %s46
    %p50 = scmp.eq.s32.totalorder %s10, 0
    %p51 = por %p49, %p50
    %p52 = scmp.ne.s32.totalorder %s44, %s46
    %p53 = scmp.eq.s32.totalorder %s15, 1
    %p54 = por %p52, %p53
    %p55 = scmp.ne.s32.totalorder %s46, %s47
    %p56 = scmp.eq.s32.totalorder %s15, 0
    %p57 = por %p55, %p56
    %p58 = scmp.ne.s32.totalorder %s46, %s47
    %p59 = scmp.eq.s32.totalorder %s16, 1
    %p60 = por %p58, %p59
    %p62 = scmp.ne.s32.totalorder %s47, %s61
    %p63 = scmp.eq.s32.totalorder %s16, 0
    %p64 = por %p62, %p63
    %s65 = ssub.s32 %s10, %s17
    %p66 = scmp.eq.s32.totalorder %s65, 0
    %s68 = sadd.s32 %s67, 1
    %s69 = scalar_select %p66, %s67, %s68
    %p72 = pneg %p66
    %p73 = scmp.eq.s32.totalorder %s10, 1
    %p74 = por %p72, %p73
    %p75 = scmp.ne.s32.totalorder %s67, %s70
    %p76 = scmp.eq.s32.totalorder %s10, 0
    %p77 = por %p75, %p76
    %p78 = scmp.ne.s32.totalorder %s67, %s70
    %p79 = scmp.eq.s32.totalorder %s15, 1
    %p80 = por %p78, %p79
    %p81 = scmp.ne.s32.totalorder %s70, %s71
    %p82 = scmp.eq.s32.totalorder %s15, 0
    %p83 = por %p81, %p82
    %p84 = scmp.ne.s32.totalorder %s70, %s71
    %p85 = scmp.eq.s32.totalorder %s16, 1
    %p86 = por %p84, %p85
    %p88 = scmp.ne.s32.totalorder %s71, %s87
    %p89 = scmp.eq.s32.totalorder %s16, 0
    %p90 = por %p88, %p89
    %s91 = ssub.s32 %s10, %s17
    %p92 = scmp.eq.s32.totalorder %s91, 0
    %s94 = sadd.s32 %s93, 1
    %s95 = scalar_select %p92, %s93, %s94
    %p98 = pneg %p92
    %p99 = scmp.eq.s32.totalorder %s10, 1
    %p100 = por %p98, %p99
    %p101 = scmp.ne.s32.totalorder %s93, %s96
    %p102 = scmp.eq.s32.totalorder %s10, 0
    %p103 = por %p101, %p102
    %p104 = scmp.ne.s32.totalorder %s93, %s96
    %p105 = scmp.eq.s32.totalorder %s15, 1
    %p106 = por %p104, %p105
    %p107 = scmp.ne.s32.totalorder %s96, %s97
    %p108 = scmp.eq.s32.totalorder %s15, 0
    %p109 = por %p107, %p108
    %p110 = scmp.ne.s32.totalorder %s96, %s97
    %p111 = scmp.eq.s32.totalorder %s16, 1
    %p112 = por %p110, %p111
    %p114 = scmp.ne.s32.totalorder %s97, %s113
    %p115 = scmp.eq.s32.totalorder %s16, 0
    %p116 = por %p114, %p115
    %p117 = scmp.le.s32.totalorder 1, %s10
    %p118 = scmp.lt.s32.totalorder %s10, 3
    %p119 = pnand %p117, %p118
    %p120 = pneg %p119
    // Predicated region
    $region9: #{_lambda_.4} parent=5 // pred_check
      _
    $region10: #{_lambda_.4} parent=5 // pred_check_branch
      %122 = sbr.rel (%p119) target = $region12
    $region11: #{_lambda_.4} parent=5 // pred_region
      %s123 = ssub.s32 %s10, 1
      // Predicated region
      $region13: #{_lambda_.4} parent=11 // pred_check
        %p124 = pneg %p57
      $region14: #{_lambda_.4} parent=11 // pred_check_branch
        %126 = sbr.rel (%p124) target = $region16
      $region15: #{_lambda_.4} parent=11 // pred_region
        _
      $region16: #{_lambda_.4} parent=11 // pred_fallthru
        _
    $region12: #{_lambda_.4} parent=5 // pred_fallthru
      _
    %p127 = scmp.lt.s32.totalorder %s10, 2
    // Predicated region
    $region17: #{_lambda_.4} parent=5 // pred_check
      %p128 = pneg %p127
    $region18: #{_lambda_.4} parent=5 // pred_check_branch
      %130 = sbr.rel (%p128) target = $region20
    $region19: #{_lambda_.4} parent=5 // pred_region
      // Predicated region
      $region21: #{_lambda_.4} parent=19 // pred_check
        %p131 = pneg %p30
      $region22: #{_lambda_.4} parent=19 // pred_check_branch
        %133 = sbr.rel (%p131) target = $region24
      $region23: #{_lambda_.4} parent=19 // pred_region
        %s134 = smul.u32 8, %s10
        %p135 = scmp.lt.s32.totalorder %s134, 15
        %s136 = scalar_select %p135, %s134, 15
        %s137 = smul.addr %s136, 4
        %s138 = scalar_lea.vmem %s0, %s137
        %s139 = smul.u32 8, %s10
      $region24: #{_lambda_.4} parent=19 // pred_fallthru
        _
    $region20: #{_lambda_.4} parent=5 // pred_fallthru
      _
    %p140 = scmp.le.s32.totalorder 1, %s10
    %p141 = scmp.lt.s32.totalorder %s10, 3
    %p142 = pnand %p140, %p141
    %p143 = pneg %p142
    // Predicated region
    $region25: #{_lambda_.4} parent=5 // pred_check
      _
    $region26: #{_lambda_.4} parent=5 // pred_check_branch
      %145 = sbr.rel (%p142) target = $region28
    $region27: #{_lambda_.4} parent=5 // pred_region
      %s146 = ssub.s32 %s10, 1
      %s147 = smul.u32 8, %s15
      %p148 = scmp.lt.s32.totalorder %s147, 15
      %s149 = scalar_select %p148, %s147, 15
      %s150 = smul.addr %s149, 4
      %s151 = scalar_lea.vmem %s0, %s150
      %p152 = pneg %p36
      %p153 = pneg %p33
      %p154 = pneg %p57
      %p155 = pneg %p54
      %p156 = pneg %p83
      %p157 = pneg %p80
      %s158 = smul.u32 8, %s15
      %p159 = scmp.lt.s32.totalorder %s158, 15
      %s160 = scalar_select %p159, %s158, 15
      %s161 = smul.addr %s160, 8
      %s162 = scalar_lea.vmem %s2, %s161
      %p163 = pneg %p109
      %p164 = pneg %p106
      %p165 = scmp.lt.s32.totalorder %s15, 1
      %s166 = scalar_select %p165, %s15, 1
      %s167 = smul.addr %s166, 8
      %s168 = scalar_lea.vmem %s3, %s167
      %s169 = smul.u32 8, %s15
      %p170 = scmp.lt.s32.totalorder %s169, 15
      %s171 = scalar_select %p170, %s169, 15
      %s172 = smul.addr %s171, 4
      %s173 = scalar_lea.vmem %s0, %s172
      %s174 = smul.u32 8, %s15
      %s175 = smul.u32 8, %s15
      %p176 = scmp.lt.s32.totalorder %s175, 15
      %s177 = scalar_select %p176, %s175, 15
      %s178 = smul.addr %s177, 8
      %s179 = scalar_lea.vmem %s2, %s178
      %s180 = smul.u32 8, %s15
      %p181 = scmp.lt.s32.totalorder %s15, 1
      %s182 = scalar_select %p181, %s15, 1
      %s183 = smul.addr %s182, 8
      %s184 = scalar_lea.vmem %s3, %s183
      %v186 = vld [vmem:[%s173] sm:$0xf]
      %v187 = vld [vmem:[%s173 + $0x4] sm:$0xf]
      %v188 = vld [vmem:[%s173 + $0x8] sm:$0xf]
      %v189 = vld [vmem:[%s173 + $0xc] sm:$0xf]
      %v190 = vld [vmem:[%s173 + $0x10] sm:$0xf]
      %v191 = vld [vmem:[%s173 + $0x14] sm:$0xf]
      %v192 = vld [vmem:[%s173 + $0x18] sm:$0xf]
      %v193 = vld [vmem:[%s173 + $0x1c] sm:$0xf]
      %v194 = vld [vmem:[%s1] sm:$0xf]
      %v195 = vld [vmem:[%s1 + $0x4] sm:$0xf]
      %v196 = vld [vmem:[%s1 + $0x8] sm:$0xf]
      %v197 = vld [vmem:[%s1 + $0xc] sm:$0xf]
      %v198 = vld [vmem:[%s1 + $0x10] sm:$0xf]
      %v199 = vld [vmem:[%s1 + $0x14] sm:$0xf]
      %v200 = vld [vmem:[%s1 + $0x18] sm:$0xf]
      %v201 = vld [vmem:[%s1 + $0x1c] sm:$0xf]
      %v202 = vld [vmem:[%s1 + $0x20] sm:$0xf]
      %v203 = vld [vmem:[%s1 + $0x24] sm:$0xf]
      %v204 = vld [vmem:[%s1 + $0x28] sm:$0xf]
      %v205 = vld [vmem:[%s1 + $0x2c] sm:$0xf]
      %v206 = vld [vmem:[%s1 + $0x30] sm:$0xf]
      %v207 = vld [vmem:[%s1 + $0x34] sm:$0xf]
      %v208 = vld [vmem:[%s1 + $0x38] sm:$0xf]
      %v209 = vld [vmem:[%s1 + $0x3c] sm:$0xf]
      %v218 = vunpack.c.l.b16 %v186
      %v219 = vunpack.c.l.b16 %v187
      %v220 = vunpack.c.l.b16 %v188
      %v221 = vunpack.c.l.b16 %v189
      %v222 = vunpack.c.l.b16 %v190
      %v223 = vunpack.c.l.b16 %v191
      %v224 = vunpack.c.l.b16 %v192
      %v225 = vunpack.c.l.b16 %v193
      %v226 = vpack.c.b16 %v219, %v218
      %v227 = vpack.c.b16 %v221, %v220
      %v228 = vpack.c.b16 %v223, %v222
      %v229 = vpack.c.b16 %v225, %v224
      %v250 = vunpack.c.l.b16 %v194
      %v251 = vunpack.c.l.b16 %v195
      %v252 = vunpack.c.l.b16 %v196
      %v253 = vunpack.c.l.b16 %v197
      %v254 = vunpack.c.l.b16 %v198
      %v255 = vunpack.c.l.b16 %v199
      %v256 = vunpack.c.l.b16 %v200
      %v257 = vunpack.c.l.b16 %v201
      %v258 = vunpack.c.l.b16 %v202
      %v259 = vunpack.c.l.b16 %v203
      %v260 = vunpack.c.l.b16 %v204
      %v261 = vunpack.c.l.b16 %v205
      %v262 = vunpack.c.l.b16 %v206
      %v263 = vunpack.c.l.b16 %v207
      %v264 = vunpack.c.l.b16 %v208
      %v265 = vunpack.c.l.b16 %v209
      %v266 = vpack.c.b16 %v251, %v250
      %v267 = vpack.c.b16 %v253, %v252
      %v268 = vpack.c.b16 %v255, %v254
      %v269 = vpack.c.b16 %v257, %v256
      %v270 = vpack.c.b16 %v259, %v258
      %v271 = vpack.c.b16 %v261, %v260
      %v272 = vpack.c.b16 %v263, %v262
      %v273 = vpack.c.b16 %v265, %v264
      %282 = vmatprep.subr.bf16.mxu0 0
      %283 = vmatpush1.bf16.msra.mxu0 %v273
      %284 = vmatprep.subr.bf16.mxu0 0
      %285 = vmatpush1.bf16.msra.mxu0 %v272
      %286 = vmatprep.subr.bf16.mxu0 0
      %287 = vmatpush1.bf16.msra.mxu0 %v271
      %288 = vmatprep.subr.bf16.mxu0 0
      %289 = vmatpush1.bf16.msra.mxu0 %v270
      %290 = vmatprep.subr.bf16.mxu0 0
      %291 = vmatpush1.bf16.msra.mxu0 %v269
      %292 = vmatprep.subr.bf16.mxu0 0
      %293 = vmatpush1.bf16.msra.mxu0 %v268
      %294 = vmatprep.subr.bf16.mxu0 0
      %295 = vmatpush1.bf16.msra.mxu0 %v267
      %296 = vmatprep.subr.bf16.mxu0 0
      %297 = vmatpush1.bf16.msra.mxu0 %v266
      %298 = vmatprep.subr.bf16.mxu0 0
      %299 = vmatpush2.bf16.msra.mxu0 0
      %300 = vmatprep.subr.bf16.mxu0 0
      %301 = vmatpush2.bf16.msra.mxu0 0
      %302 = vmatprep.subr.bf16.mxu0 0
      %303 = vmatpush2.bf16.msra.mxu0 0
      %304 = vmatprep.subr.bf16.mxu0 0
      %305 = vmatpush2.bf16.msra.mxu0 0
      %306 = vmatprep.subr.bf16.mxu0 0
      %307 = vmatpush2.bf16.msra.mxu0 0
      %308 = vmatprep.subr.bf16.mxu0 0
      %309 = vmatpush2.bf16.msra.mxu0 0
      %310 = vmatprep.subr.bf16.mxu0 0
      %311 = vmatpush2.bf16.msra.mxu0 0
      %312 = vmatprep.subr.bf16.mxu0 0
      %313 = vmatpush2.bf16.msra.mxu0 0
      %314 = vmatprep.mubr.bf16.mxu0 0
      %315 = vmatmul.mubr.bf16.gmra.mxu0 %v226
      %v316 = vpop.f32.mrf.mxu0
      %v317 = vadd.f32 0.0, %v316
      %v318 = vpop.f32.mrf.mxu0
      %v319 = vpop.f32.mrf.mxu0
      %v320 = vadd.f32 0.0, %v319
      %v321 = vpop.f32.mrf.mxu0
      %322 = vmatprep.mubr.bf16.mxu0 0
      %323 = vmatmul.mubr.bf16.gmra.mxu0 %v227
      %v324 = vpop.f32.mrf.mxu0
      %v325 = vadd.f32 0.0, %v324
      %v326 = vpop.f32.mrf.mxu0
      %v327 = vpop.f32.mrf.mxu0
      %v328 = vadd.f32 0.0, %v327
      %v329 = vpop.f32.mrf.mxu0
      %330 = vmatprep.mubr.bf16.mxu0 0
      %331 = vmatmul.mubr.bf16.gmra.mxu0 %v228
      %v332 = vpop.f32.mrf.mxu0
      %v333 = vadd.f32 0.0, %v332
      %v334 = vpop.f32.mrf.mxu0
      %v335 = vpop.f32.mrf.mxu0
      %v336 = vadd.f32 0.0, %v335
      %v337 = vpop.f32.mrf.mxu0
      %338 = vmatprep.mubr.bf16.mxu0 0
      %339 = vmatmul.mubr.bf16.gmra.mxu0 %v229
      %v340 = vpop.f32.mrf.mxu0
      %v341 = vadd.f32 0.0, %v340
      %v342 = vpop.f32.mrf.mxu0
      %v343 = vpop.f32.mrf.mxu0
      %v344 = vadd.f32 0.0, %v343
      %v345 = vpop.f32.mrf.mxu0
      %346 = vdwg.mxu0
      %347 = vst [vmem:[%s179] sm:$0xff] %v317
      %348 = vst [vmem:[%s179 + $0x8] sm:$0xff] %v320
      %349 = vst [vmem:[%s179 + $0x10] sm:$0xff] %v325
      %350 = vst [vmem:[%s179 + $0x18] sm:$0xff] %v328
      %351 = vst [vmem:[%s179 + $0x20] sm:$0xff] %v333
      %352 = vst [vmem:[%s179 + $0x28] sm:$0xff] %v336
      %353 = vst [vmem:[%s179 + $0x30] sm:$0xff] %v341
      %354 = vst [vmem:[%s179 + $0x38] sm:$0xff] %v344
      %v355 = vadd.f32 %v317, %v320
      %v356 = vadd.f32 %v355, %v325
      %v357 = vadd.f32 %v356, %v328
      %v358 = vadd.f32 %v357, %v333
      %v359 = vadd.f32 %v358, %v336
      %v360 = vadd.f32 %v359, %v341
      %v361 = vadd.f32 %v360, %v344
      %v362 = vrot.slane %v361, 4
      %v363 = vadd.f32 %v361, %v362
      %v364 = vrot.slane %v363, 2
      %v365 = vadd.f32 %v363, %v364
      %v366 = vrot.slane %v365, 1
      %v367 = vadd.f32 %v365, %v366
      %v368 = vmul.f32 %v317, %v317
      %v369 = vmul.f32 %v320, %v320
      %v370 = vmul.f32 %v325, %v325
      %v371 = vmul.f32 %v328, %v328
      %v372 = vmul.f32 %v333, %v333
      %v373 = vmul.f32 %v336, %v336
      %v374 = vmul.f32 %v341, %v341
      %v375 = vmul.f32 %v344, %v344
      %v376 = vadd.f32 %v368, %v369
      %v377 = vadd.f32 %v376, %v370
      %v378 = vadd.f32 %v377, %v371
      %v379 = vadd.f32 %v378, %v372
      %v380 = vadd.f32 %v379, %v373
      %v381 = vadd.f32 %v380, %v374
      %v382 = vadd.f32 %v381, %v375
      %v383 = vrot.slane %v382, 4
      %v384 = vadd.f32 %v382, %v383
      %v385 = vrot.slane %v384, 2
      %v386 = vadd.f32 %v384, %v385
      %v387 = vrot.slane %v386, 1
      %v388 = vadd.f32 %v386, %v387
      %vm389 = vcmask 1040384
      %v390 = vsel %vm389, %v367, %v388
      %vm391 = vcmask 1041408
      %v392 = vsel %vm391, %v390, 0.0
      %393 = vst [vmem:[%s184] sm:$0xff] %v392
      %s394 = smul.u32 8, %s15
      %p395 = scmp.lt.s32.totalorder %s394, 15
      %s396 = scalar_select %p395, %s394, 15
      %s397 = smul.addr %s396, 8
      %s398 = scalar_lea.vmem %s2, %s397
      %p399 = scmp.lt.s32.totalorder %s15, 1
      %s400 = scalar_select %p399, %s15, 1
      %s401 = smul.addr %s400, 8
      %s402 = scalar_lea.vmem %s3, %s401
      // Predicated region
      $region29: #{_lambda_.4} parent=27 // pred_check
        %p403 = pneg %p80
      $region30: #{_lambda_.4} parent=27 // pred_check_branch
        %405 = sbr.rel (%p403) target = $region32
      $region31: #{_lambda_.4} parent=27 // pred_region
        %s406 = smul.u32 8, %s15
      $region32: #{_lambda_.4} parent=27 // pred_fallthru
        _
      // Predicated region
      $region33: #{_lambda_.4} parent=27 // pred_check
        %p407 = pneg %p106
      $region34: #{_lambda_.4} parent=27 // pred_check_branch
        %409 = sbr.rel (%p407) target = $region36
      $region35: #{_lambda_.4} parent=27 // pred_region
        _
      $region36: #{_lambda_.4} parent=27 // pred_fallthru
        _
    $region28: #{_lambda_.4} parent=5 // pred_fallthru
      _
    %p410 = scmp.le.s32.totalorder 2, %s10
    // Predicated region
    $region37: #{_lambda_.4} parent=5 // pred_check
      %p411 = pneg %p410
    $region38: #{_lambda_.4} parent=5 // pred_check_branch
      %413 = sbr.rel (%p411) target = $region40
    $region39: #{_lambda_.4} parent=5 // pred_region
      %s414 = ssub.s32 %s10, 2
      // Predicated region
      $region41: #{_lambda_.4} parent=39 // pred_check
        %p415 = pneg %p86
      $region42: #{_lambda_.4} parent=39 // pred_check_branch
        %417 = sbr.rel (%p415) target = $region44
      $region43: #{_lambda_.4} parent=39 // pred_region
        %s418 = smul.u32 8, %s16
        %p419 = scmp.lt.s32.totalorder %s418, 15
        %s420 = scalar_select %p419, %s418, 15
        %s421 = smul.addr %s420, 8
        %s422 = scalar_lea.vmem %s2, %s421
      $region44: #{_lambda_.4} parent=39 // pred_fallthru
        _
      // Predicated region
      $region45: #{_lambda_.4} parent=39 // pred_check
        %p423 = pneg %p112
      $region46: #{_lambda_.4} parent=39 // pred_check_branch
        %425 = sbr.rel (%p423) target = $region48
      $region47: #{_lambda_.4} parent=39 // pred_region
        %p426 = scmp.lt.s32.totalorder %s16, 1
        %s427 = scalar_select %p426, %s16, 1
        %s428 = smul.addr %s427, 8
        %s429 = scalar_lea.vmem %s3, %s428
      $region48: #{_lambda_.4} parent=39 // pred_fallthru
        _
    $region40: #{_lambda_.4} parent=5 // pred_fallthru
      _
  $region6: #{_lambda_.4} parent=0 // loop_footer
    %s14 = sadd.s32 1, %s10
  $region7: #{_lambda_.4} parent=0 // loop_footer_branch
    %9 = sbr.rel target = $region3
  $region8: #{_lambda_.4} parent=0 // loop_exit
    _

// kernel: _lambda_.5
$region0: #{_lambda_.5}
  #allocation0 [shape = 'u32[]', space=smem, size = 0x4, offset = 0x4, fixed_abs, tag = 'smem constant byte address 0x4 - core index']
  #allocation1 [shape = 'u32[144,128]{1,0:T(1,128)}', space=vmem, size = 0x12000, scoped, tag = 'internal scratch']
  %s0 = inlined_call_operand.vmem [shape: f32[128,128], index: 0, kind: input, shape index: {}]
  %s1 = inlined_call_operand.vmem [shape: f32[128,128], index: 1, kind: input, shape index: {}]
  %s2 = inlined_call_operand.vmem [shape: f32[1,128], index: 2, kind: input, shape index: {}]
  %s3 = inlined_call_operand.vmem [shape: f32[1,128], index: 3, kind: input, shape index: {}]
  %s4 = inlined_call_operand.vmem [shape: f32[1,128], index: 4, kind: input, shape index: {}]
  %s5 = inlined_call_operand.vmem [shape: f32[1,128], index: 5, kind: input, shape index: {}]
  %s6 = inlined_call_operand.vmem [shape: bf16[128,128], index: 6, kind: output, shape index: {}]
  %s7 = sld [smem:[#allocation0]]
  $region57: #{_lambda_.5} parent=0
    _
  %s9 = ssub.s32 1, %s7
  %s10 = scalar_select 0, %s9, %s7
  loop: start=0, step=1, limit=4
  $region2: #{_lambda_.5} parent=0 // loop_pre_header
    _
  $region3: #{_lambda_.5} parent=0 // loop_header
    %s12 = sphi 0, %s16
    %p13 = scmp.ge.s32.totalorder %s12, 4
    %s22 = sphi 0, %s24
    %s25 = sphi 0, %s22
    %s26 = sphi 0, %s25
    %s42 = sphi 0, %s26
    %s48 = sphi 0, %s50
    %s51 = sphi 0, %s48
    %s52 = sphi 0, %s51
    %s68 = sphi 0, %s52
    %s72 = sphi 0, %s72
    %s74 = sphi 0, %s72
    %s75 = sphi 0, %s74
    %s89 = sphi 0, %s75
    %s93 = sphi 0, %s93
    %s95 = sphi 0, %s93
    %s96 = sphi 0, %s95
    %s110 = sphi 0, %s96
    %s114 = sphi 0, %s114
    %s116 = sphi 0, %s114
    %s117 = sphi 0, %s116
    %s131 = sphi 0, %s117
    %s135 = sphi 0, %s135
    %s137 = sphi 0, %s135
    %s138 = sphi 0, %s137
    %s152 = sphi 0, %s138
    %s158 = sphi 0, %s160
    %s161 = sphi 0, %s158
    %s162 = sphi 0, %s161
    %s178 = sphi 0, %s162
  $region4: #{_lambda_.5} parent=0 // loop_header_branch
    %15 = sbr.rel (%p13) target = $region8
  $region5: #{_lambda_.5} parent=0 // loop_body
    %s17 = ssub.s32 %s12, 1
    %s18 = ssub.s32 %s12, 2
    %s19 = sadd.s32 %s12, 1
    %s20 = ssub.s32 %s12, %s19
    %p21 = scmp.eq.s32.totalorder %s20, 0
    %s23 = sadd.s32 %s22, 1
    %s24 = scalar_select %p21, %s22, %s23
    %p27 = pneg %p21
    %p28 = scmp.eq.s32.totalorder %s12, 1
    %p29 = por %p27, %p28
    %p30 = scmp.ne.s32.totalorder %s22, %s25
    %p31 = scmp.eq.s32.totalorder %s12, 0
    %p32 = por %p30, %p31
    %p33 = scmp.ne.s32.totalorder %s22, %s25
    %p34 = scmp.eq.s32.totalorder %s17, 1
    %p35 = por %p33, %p34
    %p36 = scmp.ne.s32.totalorder %s25, %s26
    %p37 = scmp.eq.s32.totalorder %s17, 0
    %p38 = por %p36, %p37
    %p39 = scmp.ne.s32.totalorder %s25, %s26
    %p40 = scmp.eq.s32.totalorder %s18, 1
    %p41 = por %p39, %p40
    %p43 = scmp.ne.s32.totalorder %s26, %s42
    %p44 = scmp.eq.s32.totalorder %s18, 0
    %p45 = por %p43, %p44
    %s46 = ssub.s32 %s12, %s19
    %p47 = scmp.eq.s32.totalorder %s46, 0
    %s49 = sadd.s32 %s48, 1
    %s50 = scalar_select %p47, %s48, %s49
    %p53 = pneg %p47
    %p54 = scmp.eq.s32.totalorder %s12, 1
    %p55 = por %p53, %p54
    %p56 = scmp.ne.s32.totalorder %s48, %s51
    %p57 = scmp.eq.s32.totalorder %s12, 0
    %p58 = por %p56, %p57
    %p59 = scmp.ne.s32.totalorder %s48, %s51
    %p60 = scmp.eq.s32.totalorder %s17, 1
    %p61 = por %p59, %p60
    %p62 = scmp.ne.s32.totalorder %s51, %s52
    %p63 = scmp.eq.s32.totalorder %s17, 0
    %p64 = por %p62, %p63
    %p65 = scmp.ne.s32.totalorder %s51, %s52
    %p66 = scmp.eq.s32.totalorder %s18, 1
    %p67 = por %p65, %p66
    %p69 = scmp.ne.s32.totalorder %s52, %s68
    %p70 = scmp.eq.s32.totalorder %s18, 0
    %p71 = por %p69, %p70
    %s73 = sadd.s32 %s72, 1
    %p76 = scmp.eq.s32.totalorder %s12, 1
    %p77 = scmp.ne.s32.totalorder %s72, %s74
    %p78 = scmp.eq.s32.totalorder %s12, 0
    %p79 = por %p77, %p78
    %p80 = scmp.ne.s32.totalorder %s72, %s74
    %p81 = scmp.eq.s32.totalorder %s17, 1
    %p82 = por %p80, %p81
    %p83 = scmp.ne.s32.totalorder %s74, %s75
    %p84 = scmp.eq.s32.totalorder %s17, 0
    %p85 = por %p83, %p84
    %p86 = scmp.ne.s32.totalorder %s74, %s75
    %p87 = scmp.eq.s32.totalorder %s18, 1
    %p88 = por %p86, %p87
    %p90 = scmp.ne.s32.totalorder %s75, %s89
    %p91 = scmp.eq.s32.totalorder %s18, 0
    %p92 = por %p90, %p91
    %s94 = sadd.s32 %s93, 1
    %p97 = scmp.eq.s32.totalorder %s12, 1
    %p98 = scmp.ne.s32.totalorder %s93, %s95
    %p99 = scmp.eq.s32.totalorder %s12, 0
    %p100 = por %p98, %p99
    %p101 = scmp.ne.s32.totalorder %s93, %s95
    %p102 = scmp.eq.s32.totalorder %s17, 1
    %p103 = por %p101, %p102
    %p104 = scmp.ne.s32.totalorder %s95, %s96
    %p105 = scmp.eq.s32.totalorder %s17, 0
    %p106 = por %p104, %p105
    %p107 = scmp.ne.s32.totalorder %s95, %s96
    %p108 = scmp.eq.s32.totalorder %s18, 1
    %p109 = por %p107, %p108
    %p111 = scmp.ne.s32.totalorder %s96, %s110
    %p112 = scmp.eq.s32.totalorder %s18, 0
    %p113 = por %p111, %p112
    %s115 = sadd.s32 %s114, 1
    %p118 = scmp.eq.s32.totalorder %s12, 1
    %p119 = scmp.ne.s32.totalorder %s114, %s116
    %p120 = scmp.eq.s32.totalorder %s12, 0
    %p121 = por %p119, %p120
    %p122 = scmp.ne.s32.totalorder %s114, %s116
    %p123 = scmp.eq.s32.totalorder %s17, 1
    %p124 = por %p122, %p123
    %p125 = scmp.ne.s32.totalorder %s116, %s117
    %p126 = scmp.eq.s32.totalorder %s17, 0
    %p127 = por %p125, %p126
    %p128 = scmp.ne.s32.totalorder %s116, %s117
    %p129 = scmp.eq.s32.totalorder %s18, 1
    %p130 = por %p128, %p129
    %p132 = scmp.ne.s32.totalorder %s117, %s131
    %p133 = scmp.eq.s32.totalorder %s18, 0
    %p134 = por %p132, %p133
    %s136 = sadd.s32 %s135, 1
    %p139 = scmp.eq.s32.totalorder %s12, 1
    %p140 = scmp.ne.s32.totalorder %s135, %s137
    %p141 = scmp.eq.s32.totalorder %s12, 0
    %p142 = por %p140, %p141
    %p143 = scmp.ne.s32.totalorder %s135, %s137
    %p144 = scmp.eq.s32.totalorder %s17, 1
    %p145 = por %p143, %p144
    %p146 = scmp.ne.s32.totalorder %s137, %s138
    %p147 = scmp.eq.s32.totalorder %s17, 0
    %p148 = por %p146, %p147
    %p149 = scmp.ne.s32.totalorder %s137, %s138
    %p150 = scmp.eq.s32.totalorder %s18, 1
    %p151 = por %p149, %p150
    %p153 = scmp.ne.s32.totalorder %s138, %s152
    %p154 = scmp.eq.s32.totalorder %s18, 0
    %p155 = por %p153, %p154
    %s156 = ssub.s32 %s12, %s19
    %p157 = scmp.eq.s32.totalorder %s156, 0
    %s159 = sadd.s32 %s158, 1
    %s160 = scalar_select %p157, %s158, %s159
    %p163 = pneg %p157
    %p164 = scmp.eq.s32.totalorder %s12, 1
    %p165 = por %p163, %p164
    %p166 = scmp.ne.s32.totalorder %s158, %s161
    %p167 = scmp.eq.s32.totalorder %s12, 0
    %p168 = por %p166, %p167
    %p169 = scmp.ne.s32.totalorder %s158, %s161
    %p170 = scmp.eq.s32.totalorder %s17, 1
    %p171 = por %p169, %p170
    %p172 = scmp.ne.s32.totalorder %s161, %s162
    %p173 = scmp.eq.s32.totalorder %s17, 0
    %p174 = por %p172, %p173
    %p175 = scmp.ne.s32.totalorder %s161, %s162
    %p176 = scmp.eq.s32.totalorder %s18, 1
    %p177 = por %p175, %p176
    %p179 = scmp.ne.s32.totalorder %s162, %s178
    %p180 = scmp.eq.s32.totalorder %s18, 0
    %p181 = por %p179, %p180
    %p182 = scmp.le.s32.totalorder 1, %s12
    %p183 = scmp.lt.s32.totalorder %s12, 3
    %p184 = pnand %p182, %p183
    %p185 = pneg %p184
    // Predicated region
    $region9: #{_lambda_.5} parent=5 // pred_check
      _
    $region10: #{_lambda_.5} parent=5 // pred_check_branch
      %187 = sbr.rel (%p184) target = $region12
    $region11: #{_lambda_.5} parent=5 // pred_region
      %s188 = ssub.s32 %s12, 1
      // Predicated region
      $region13: #{_lambda_.5} parent=11 // pred_check
        %p189 = pneg %p85
      $region14: #{_lambda_.5} parent=11 // pred_check_branch
        %191 = sbr.rel (%p189) target = $region16
      $region15: #{_lambda_.5} parent=11 // pred_region
        _
      $region16: #{_lambda_.5} parent=11 // pred_fallthru
        _
      // Predicated region
      $region17: #{_lambda_.5} parent=11 // pred_check
        %p192 = pneg %p106
      $region18: #{_lambda_.5} parent=11 // pred_check_branch
        %194 = sbr.rel (%p192) target = $region20
      $region19: #{_lambda_.5} parent=11 // pred_region
        _
      $region20: #{_lambda_.5} parent=11 // pred_fallthru
        _
      // Predicated region
      $region21: #{_lambda_.5} parent=11 // pred_check
        %p195 = pneg %p127
      $region22: #{_lambda_.5} parent=11 // pred_check_branch
        %197 = sbr.rel (%p195) target = $region24
      $region23: #{_lambda_.5} parent=11 // pred_region
        _
      $region24: #{_lambda_.5} parent=11 // pred_fallthru
        _
      // Predicated region
      $region25: #{_lambda_.5} parent=11 // pred_check
        %p198 = pneg %p148
      $region26: #{_lambda_.5} parent=11 // pred_check_branch
        %200 = sbr.rel (%p198) target = $region28
      $region27: #{_lambda_.5} parent=11 // pred_region
        _
      $region28: #{_lambda_.5} parent=11 // pred_fallthru
        _
    $region12: #{_lambda_.5} parent=5 // pred_fallthru
      _
    %p201 = scmp.lt.s32.totalorder %s12, 2
    // Predicated region
    $region29: #{_lambda_.5} parent=5 // pred_check
      %p202 = pneg %p201
    $region30: #{_lambda_.5} parent=5 // pred_check_branch
      %204 = sbr.rel (%p202) target = $region32
    $region31: #{_lambda_.5} parent=5 // pred_region
      // Predicated region
      $region33: #{_lambda_.5} parent=31 // pred_check
        %p205 = pneg %p32
      $region34: #{_lambda_.5} parent=31 // pred_check_branch
        %207 = sbr.rel (%p205) target = $region36
      $region35: #{_lambda_.5} parent=31 // pred_region
        %s208 = smul.u32 8, %s12
        %p209 = scmp.lt.s32.totalorder %s208, 15
        %s210 = scalar_select %p209, %s208, 15
        %s211 = smul.addr %s210, 8
        %s212 = scalar_lea.vmem %s0, %s211
        %s213 = smul.u32 8, %s12
      $region36: #{_lambda_.5} parent=31 // pred_fallthru
        _
      // Predicated region
      $region37: #{_lambda_.5} parent=31 // pred_check
        %p214 = pneg %p58
      $region38: #{_lambda_.5} parent=31 // pred_check_branch
        %216 = sbr.rel (%p214) target = $region40
      $region39: #{_lambda_.5} parent=31 // pred_region
        %s217 = smul.u32 8, %s12
        %p218 = scmp.lt.s32.totalorder %s217, 15
        %s219 = scalar_select %p218, %s217, 15
        %s220 = smul.addr %s219, 8
        %s221 = scalar_lea.vmem %s1, %s220
        %s222 = smul.u32 8, %s12
      $region40: #{_lambda_.5} parent=31 // pred_fallthru
        _
    $region32: #{_lambda_.5} parent=5 // pred_fallthru
      _
    %p223 = scmp.le.s32.totalorder 1, %s12
    %p224 = scmp.lt.s32.totalorder %s12, 3
    %p225 = pnand %p223, %p224
    %p226 = pneg %p225
    // Predicated region
    $region41: #{_lambda_.5} parent=5 // pred_check
      _
    $region42: #{_lambda_.5} parent=5 // pred_check_branch
      %228 = sbr.rel (%p225) target = $region44
    $region43: #{_lambda_.5} parent=5 // pred_region
      %s229 = ssub.s32 %s12, 1
      %s230 = smul.u32 8, %s17
      %p231 = scmp.lt.s32.totalorder %s230, 15
      %s232 = scalar_select %p231, %s230, 15
      %s233 = smul.addr %s232, 8
      %s234 = scalar_lea.vmem %s0, %s233
      %p235 = pneg %p38
      %p236 = pneg %p35
      %s237 = smul.u32 8, %s17
      %p238 = scmp.lt.s32.totalorder %s237, 15
      %s239 = scalar_select %p238, %s237, 15
      %s240 = smul.addr %s239, 8
      %s241 = scalar_lea.vmem %s1, %s240
      %p242 = pneg %p64
      %p243 = pneg %p61
      %p244 = pneg %p85
      %p245 = pneg %p82
      %p246 = pneg %p106
      %p247 = pneg %p103
      %p248 = pneg %p127
      %p249 = pneg %p124
      %p250 = pneg %p148
      %p251 = pneg %p145
      %p252 = pneg %p174
      %p253 = pneg %p171
      %s254 = smul.u32 8, %s17
      %p255 = scmp.lt.s32.totalorder %s254, 15
      %s256 = scalar_select %p255, %s254, 15
      %s257 = smul.addr %s256, 4
      %s258 = scalar_lea.vmem %s6, %s257
      %s259 = smul.u32 8, %s17
      %p260 = scmp.lt.s32.totalorder %s259, 15
      %s261 = scalar_select %p260, %s259, 15
      %s262 = smul.addr %s261, 8
      %s263 = scalar_lea.vmem %s0, %s262
      %s264 = smul.u32 8, %s17
      %s265 = smul.u32 8, %s17
      %p266 = scmp.lt.s32.totalorder %s265, 15
      %s267 = scalar_select %p266, %s265, 15
      %s268 = smul.addr %s267, 8
      %s269 = scalar_lea.vmem %s1, %s268
      %s270 = smul.u32 8, %s17
      %s271 = smul.u32 8, %s17
      %p272 = scmp.lt.s32.totalorder %s271, 15
      %s273 = scalar_select %p272, %s271, 15
      %s274 = smul.addr %s273, 4
      %s275 = scalar_lea.vmem %s6, %s274
      %s276 = smul.u32 8, %s17
      %v277 = vld [vmem:[%s263] sm:$0xff]
      %v278 = vld [vmem:[%s263 + $0x8] sm:$0xff]
      %v279 = vld [vmem:[%s263 + $0x10] sm:$0xff]
      %v280 = vld [vmem:[%s263 + $0x18] sm:$0xff]
      %v281 = vld [vmem:[%s263 + $0x20] sm:$0xff]
      %v282 = vld [vmem:[%s263 + $0x28] sm:$0xff]
      %v283 = vld [vmem:[%s263 + $0x30] sm:$0xff]
      %v284 = vld [vmem:[%s263 + $0x38] sm:$0xff]
      %v285 = vld [vmem:[%s2] sm:$0x1]
      %v287 = vlaneseq
      %v288 = vshrl.u32 %v287, 7
      %v289 = vsub.s32 0, %v288
      %v290 = vrot.slane %v285, %v289
      %v292 = vmul.f32 %v277, %v290
      %v293 = vmul.f32 %v278, %v290
      %v294 = vmul.f32 %v279, %v290
      %v295 = vmul.f32 %v280, %v290
      %v296 = vmul.f32 %v281, %v290
      %v297 = vmul.f32 %v282, %v290
      %v298 = vmul.f32 %v283, %v290
      %v299 = vmul.f32 %v284, %v290
      %v300 = vld [vmem:[%s3] sm:$0x1]
      %v302 = vlaneseq
      %v303 = vshrl.u32 %v302, 7
      %v304 = vsub.s32 0, %v303
      %v305 = vrot.slane %v300, %v304
      %v307 = vadd.f32 %v292, %v305
      %v308 = vadd.f32 %v293, %v305
      %v309 = vadd.f32 %v294, %v305
      %v310 = vadd.f32 %v295, %v305
      %v311 = vadd.f32 %v296, %v305
      %v312 = vadd.f32 %v297, %v305
      %v313 = vadd.f32 %v298, %v305
      %v314 = vadd.f32 %v299, %v305
      %v315 = vld [vmem:[%s269] sm:$0xff]
      %v316 = vld [vmem:[%s269 + $0x8] sm:$0xff]
      %v317 = vld [vmem:[%s269 + $0x10] sm:$0xff]
      %v318 = vld [vmem:[%s269 + $0x18] sm:$0xff]
      %v319 = vld [vmem:[%s269 + $0x20] sm:$0xff]
      %v320 = vld [vmem:[%s269 + $0x28] sm:$0xff]
      %v321 = vld [vmem:[%s269 + $0x30] sm:$0xff]
      %v322 = vld [vmem:[%s269 + $0x38] sm:$0xff]
      %v323 = vld [vmem:[%s4] sm:$0x1]
      %v325 = vlaneseq
      %v326 = vshrl.u32 %v325, 7
      %v327 = vsub.s32 0, %v326
      %v328 = vrot.slane %v323, %v327
      %v330 = vmul.f32 %v315, %v328
      %v331 = vmul.f32 %v316, %v328
      %v332 = vmul.f32 %v317, %v328
      %v333 = vmul.f32 %v318, %v328
      %v334 = vmul.f32 %v319, %v328
      %v335 = vmul.f32 %v320, %v328
      %v336 = vmul.f32 %v321, %v328
      %v337 = vmul.f32 %v322, %v328
      %v338 = vadd.f32 %v307, %v330
      %v339 = vadd.f32 %v308, %v331
      %v340 = vadd.f32 %v309, %v332
      %v341 = vadd.f32 %v310, %v333
      %v342 = vadd.f32 %v311, %v334
      %v343 = vadd.f32 %v312, %v335
      %v344 = vadd.f32 %v313, %v336
      %v345 = vadd.f32 %v314, %v337
      %v346 = vld [vmem:[%s5] sm:$0x1]
      %v348 = vlaneseq
      %v349 = vshrl.u32 %v348, 7
      %v350 = vsub.s32 0, %v349
      %v351 = vrot.slane %v346, %v350
      %v353 = vadd.f32 %v338, %v351
      %v354 = vadd.f32 %v339, %v351
      %v355 = vadd.f32 %v340, %v351
      %v356 = vadd.f32 %v341, %v351
      %v357 = vadd.f32 %v342, %v351
      %v358 = vadd.f32 %v343, %v351
      %v359 = vadd.f32 %v344, %v351
      %v360 = vadd.f32 %v345, %v351
      %v361 = vmax.f32 %v353, 0.0
      %v362 = vmax.f32 %v354, 0.0
      %v363 = vmax.f32 %v355, 0.0
      %v364 = vmax.f32 %v356, 0.0
      %v365 = vmax.f32 %v357, 0.0
      %v366 = vmax.f32 %v358, 0.0
      %v367 = vmax.f32 %v359, 0.0
      %v368 = vmax.f32 %v360, 0.0
      %v369 = vpack.c.bf16 %v362, %v361
      %v370 = vpack.c.bf16 %v364, %v363
      %v371 = vpack.c.bf16 %v366, %v365
      %v372 = vpack.c.bf16 %v368, %v367
      %v377 = vunpack.c.l.b16 %v369
      %v378 = vunpack.c.h.b16 %v369
      %v379 = vunpack.c.l.b16 %v370
      %v380 = vunpack.c.h.b16 %v370
      %v381 = vunpack.c.l.b16 %v371
      %v382 = vunpack.c.h.b16 %v371
      %v383 = vunpack.c.l.b16 %v372
      %v384 = vunpack.c.h.b16 %v372
      %v385 = vpack.c.b16 %v377, %v377
      %v386 = vpack.c.b16 %v378, %v378
      %v387 = vpack.c.b16 %v379, %v379
      %v388 = vpack.c.b16 %v380, %v380
      %v389 = vpack.c.b16 %v381, %v381
      %v390 = vpack.c.b16 %v382, %v382
      %v391 = vpack.c.b16 %v383, %v383
      %v392 = vpack.c.b16 %v384, %v384
      %401 = vst [vmem:[%s275] sm:$0xf] %v385
      %402 = vst [vmem:[%s275 + $0x4] sm:$0xf] %v386
      %403 = vst [vmem:[%s275 + $0x8] sm:$0xf] %v387
      %404 = vst [vmem:[%s275 + $0xc] sm:$0xf] %v388
      %405 = vst [vmem:[%s275 + $0x10] sm:$0xf] %v389
      %406 = vst [vmem:[%s275 + $0x14] sm:$0xf] %v390
      %407 = vst [vmem:[%s275 + $0x18] sm:$0xf] %v391
      %408 = vst [vmem:[%s275 + $0x1c] sm:$0xf] %v392
      %s409 = smul.u32 8, %s17
      %p410 = scmp.lt.s32.totalorder %s409, 15
      %s411 = scalar_select %p410, %s409, 15
      %s412 = smul.addr %s411, 4
      %s413 = scalar_lea.vmem %s6, %s412
      // Predicated region
      $region45: #{_lambda_.5} parent=43 // pred_check
        %p414 = pneg %p171
      $region46: #{_lambda_.5} parent=43 // pred_check_branch
        %416 = sbr.rel (%p414) target = $region48
      $region47: #{_lambda_.5} parent=43 // pred_region
        %s417 = smul.u32 8, %s17
      $region48: #{_lambda_.5} parent=43 // pred_fallthru
        _
    $region44: #{_lambda_.5} parent=5 // pred_fallthru
      _
    %p418 = scmp.le.s32.totalorder 2, %s12
    // Predicated region
    $region49: #{_lambda_.5} parent=5 // pred_check
      %p419 = pneg %p418
    $region50: #{_lambda_.5} parent=5 // pred_check_branch
      %421 = sbr.rel (%p419) target = $region52
    $region51: #{_lambda_.5} parent=5 // pred_region
      %s422 = ssub.s32 %s12, 2
      // Predicated region
      $region53: #{_lambda_.5} parent=51 // pred_check
        %p423 = pneg %p177
      $region54: #{_lambda_.5} parent=51 // pred_check_branch
        %425 = sbr.rel (%p423) target = $region56
      $region55: #{_lambda_.5} parent=51 // pred_region
        %s426 = smul.u32 8, %s18
        %p427 = scmp.lt.s32.totalorder %s426, 15
        %s428 = scalar_select %p427, %s426, 15
        %s429 = smul.addr %s428, 4
        %s430 = scalar_lea.vmem %s6, %s429
      $region56: #{_lambda_.5} parent=51 // pred_fallthru
        _
    $region52: #{_lambda_.5} parent=5 // pred_fallthru
      _
  $region6: #{_lambda_.5} parent=0 // loop_footer
    %s16 = sadd.s32 1, %s12
  $region7: #{_lambda_.5} parent=0 // loop_footer_branch
    %11 = sbr.rel target = $region3
  $region8: #{_lambda_.5} parent=0 // loop_exit
    _

</llo_original>
